<compile_context>
chip_gen: v5e
topology: v5e:2x2
jax: 0.10.0
libtpu: 0.0.40
codegen_flags: <defaults>
</compile_context>

<pallas_src>
import functools
import math

import jax
import jax.numpy as jnp
from jax.experimental import pallas as pl
from jax.experimental.pallas import tpu as pltpu

VMEM = pltpu.MemorySpace.VMEM
COMPUTE_DTYPE = jnp.bfloat16          # MXU inputs / inter-kernel activations


def _default_vmem_limit():
    # Generation-aware VMEM budget, leaving headroom for compiler scratch and
    # pipeline buffers (v5e/v6e: 128 MiB physical -> ~96 MiB; v7x: 64 -> ~48).
    try:
        cap = int(pltpu.get_tpu_info().vmem_capacity_bytes)
        return max(32 << 20, min(cap * 3 // 4, 100 << 20))
    except Exception:
        return 64 << 20


VMEM_LIMIT = _default_vmem_limit()


def _pick_tile(dim, preferred, align):
    """Largest t <= preferred that divides dim and is a multiple of align, else dim."""
    t = min(preferred, dim)
    t -= t % align
    while t >= align:
        if dim % t == 0:
            return t
        t -= align
    return dim


def _ln_f32(x, g, b, eps=1e-12):
    mean = jnp.mean(x, axis=-1, keepdims=True)
    var = jnp.mean(jnp.square(x - mean), axis=-1, keepdims=True)
    return (x - mean) * jax.lax.rsqrt(var + eps) * g + b


# ----------------------------------------------------------------------------
# Kernel 1: tiled matmul + bias  (used for the fused Q/K/V projection)
# ----------------------------------------------------------------------------
def _dense_kernel(x_ref, w_ref, b_ref, o_ref, acc_ref):
    @pl.when(pl.program_id(2) == 0)
    def _init():
        acc_ref[...] = jnp.zeros_like(acc_ref)

    acc_ref[...] += jnp.dot(x_ref[...], w_ref[...],
                            preferred_element_type=jnp.float32)

    @pl.when(pl.program_id(2) == pl.num_programs(2) - 1)
    def _done():
        o_ref[...] = (acc_ref[...] + b_ref[...]).astype(o_ref.dtype)


def dense(x, w, b, *, tm=512, tn=256, tk=512):
    M, K = x.shape
    N = w.shape[1]
    tm = _pick_tile(M, tm, 16)
    tn = _pick_tile(N, tn, 128)
    tk = _pick_tile(K, tk, 128)
    # TODO(synk): constant-index weight/bias blocks could use
    # pipeline_mode=pl.Buffered(1) to halve their VMEM footprint.
    return pl.pallas_call(
        _dense_kernel,
        out_shape=jax.ShapeDtypeStruct((M, N), x.dtype),
        grid=(M // tm, N // tn, K // tk),
        in_specs=[
            pl.BlockSpec((tm, tk), lambda i, j, k: (i, k)),
            pl.BlockSpec((tk, tn), lambda i, j, k: (k, j)),
            pl.BlockSpec((1, tn), lambda i, j, k: (0, j)),
        ],
        out_specs=pl.BlockSpec((tm, tn), lambda i, j, k: (i, j)),
        scratch_shapes=[pltpu.VMEM((tm, tn), jnp.float32)],
        compiler_params=pltpu.CompilerParams(
            dimension_semantics=("parallel", "parallel", "arbitrary"),
            vmem_limit_bytes=VMEM_LIMIT),
    )(x, w, b.reshape(1, N))


# ----------------------------------------------------------------------------
# Kernel 2: plain LayerNorm (embeddings), tiled over rows
# ----------------------------------------------------------------------------
def _ln_kernel(x_ref, g_ref, b_ref, o_ref):
    o_ref[...] = _ln_f32(x_ref[...].astype(jnp.float32),
                         g_ref[...], b_ref[...]).astype(o_ref.dtype)


def layernorm(x, g, b, out_dtype=COMPUTE_DTYPE):
    M, H = x.shape
    tm = _pick_tile(M, 512, 8)
    return pl.pallas_call(
        _ln_kernel,
        out_shape=jax.ShapeDtypeStruct((M, H), out_dtype),
        grid=(M // tm,),
        in_specs=[pl.BlockSpec((tm, H), lambda i: (i, 0)),
                  pl.BlockSpec((1, H), lambda i: (0, 0)),
                  pl.BlockSpec((1, H), lambda i: (0, 0))],
        out_specs=pl.BlockSpec((tm, H), lambda i: (i, 0)),
        compiler_params=pltpu.CompilerParams(
            dimension_semantics=("parallel",)),
    )(x, g.reshape(1, H), b.reshape(1, H))


# ----------------------------------------------------------------------------
# Kernel 3: fused  LN(resid + x @ W + b)   (attention output proj + add + LN1)
# ----------------------------------------------------------------------------
def _matmul_add_ln_kernel(x_ref, w_ref, b_ref, r_ref, g_ref, be_ref, o_ref):
    y = jnp.dot(x_ref[...], w_ref[...], preferred_element_type=jnp.float32)
    y = y + b_ref[...] + r_ref[...].astype(jnp.float32)
    o_ref[...] = _ln_f32(y, g_ref[...], be_ref[...]).astype(o_ref.dtype)


def matmul_add_ln(x, w, b, resid, g, beta):
    M, K = x.shape
    N = w.shape[1]
    tm = _pick_tile(M, 512, 16)
    return pl.pallas_call(
        _matmul_add_ln_kernel,
        out_shape=jax.ShapeDtypeStruct((M, N), resid.dtype),
        grid=(M // tm,),
        in_specs=[pl.BlockSpec((tm, K), lambda i: (i, 0)),
                  pl.BlockSpec((K, N), lambda i: (0, 0)),
                  pl.BlockSpec((1, N), lambda i: (0, 0)),
                  pl.BlockSpec((tm, N), lambda i: (i, 0)),
                  pl.BlockSpec((1, N), lambda i: (0, 0)),
                  pl.BlockSpec((1, N), lambda i: (0, 0))],
        out_specs=pl.BlockSpec((tm, N), lambda i: (i, 0)),
        compiler_params=pltpu.CompilerParams(
            dimension_semantics=("parallel",),
            vmem_limit_bytes=VMEM_LIMIT),
    )(x, w, b.reshape(1, N), resid, g.reshape(1, N), beta.reshape(1, N))


# ----------------------------------------------------------------------------
# Kernel 4: fused FFN  LN2(x + gelu(x@W1+b1)@W2 + b2), K-tiled over I.
#           W1/W2 are streamed as (H, tI)/(tI, H) slabs; the intermediate only
#           ever exists at width tI; y accumulates in a (tm, H) f32 scratch.
# ----------------------------------------------------------------------------
def _ffn_ln_kernel(x_ref, w1_ref, b1_ref, w2_ref, b2_ref, g_ref, be_ref,
                   o_ref, acc_ref):
    kk = pl.program_id(1)

    @pl.when(kk == 0)
    def _init():
        acc_ref[...] = jnp.zeros_like(acc_ref)

    x = x_ref[...]
    h = jnp.dot(x, w1_ref[...], preferred_element_type=jnp.float32) + b1_ref[...]
    # TODO(synk): HF BERT uses exact erf-based GELU; tanh approximation used here.
    h = jax.nn.gelu(h, approximate=True)
    acc_ref[...] += jnp.dot(h.astype(w2_ref.dtype), w2_ref[...],
                            preferred_element_type=jnp.float32)

    @pl.when(kk == pl.num_programs(1) - 1)
    def _done():
        y = acc_ref[...] + b2_ref[...] + x.astype(jnp.float32)
        o_ref[...] = _ln_f32(y, g_ref[...], be_ref[...]).astype(o_ref.dtype)


def ffn_ln(x, w1, b1, w2, b2, g, beta, *, tm=512, ti=512):
    M, H = x.shape
    I = w1.shape[1]
    tm = _pick_tile(M, tm, 16)
    ti = _pick_tile(I, ti, 128)
    return pl.pallas_call(
        _ffn_ln_kernel,
        out_shape=jax.ShapeDtypeStruct((M, H), x.dtype),
        grid=(M // tm, I // ti),
        in_specs=[pl.BlockSpec((tm, H), lambda i, k: (i, 0)),
                  pl.BlockSpec((H, ti), lambda i, k: (0, k)),
                  pl.BlockSpec((1, ti), lambda i, k: (0, k)),
                  pl.BlockSpec((ti, H), lambda i, k: (k, 0)),
                  pl.BlockSpec((1, H), lambda i, k: (0, 0)),
                  pl.BlockSpec((1, H), lambda i, k: (0, 0)),
                  pl.BlockSpec((1, H), lambda i, k: (0, 0))],
        out_specs=pl.BlockSpec((tm, H), lambda i, k: (i, 0)),
        scratch_shapes=[pltpu.VMEM((tm, H), jnp.float32)],
        compiler_params=pltpu.CompilerParams(
            dimension_semantics=("parallel", "arbitrary"),
            vmem_limit_bytes=VMEM_LIMIT),
    )(x, w1, b1.reshape(1, I), w2, b2.reshape(1, H),
      g.reshape(1, H), beta.reshape(1, H))


# ----------------------------------------------------------------------------
# Kernel 5: self-attention reading Q/K/V head-group columns directly from the
#           fused (B, S, 3H) qkv activation.  hb heads per grid step; each
#           head's context is written straight into its output column slice.
#           1/sqrt(dh) is pre-folded into the Q projection weights.
# ----------------------------------------------------------------------------
def _attn_kernel(q_ref, k_ref, v_ref, m_ref, o_ref, *, hb, dh, bq, bk, bv):
    m = m_ref[...]                                    # (1, S) additive mask, f32
    for i in range(hb):                               # static unroll, hb is small
        q = q_ref[:, bq + i * dh: bq + (i + 1) * dh]
        k = k_ref[:, bk + i * dh: bk + (i + 1) * dh]
        v = v_ref[:, bv + i * dh: bv + (i + 1) * dh]
        s = jax.lax.dot_general(q, k, (((1,), (1,)), ((), ())),
                                preferred_element_type=jnp.float32)    # (S, S)
        s = s + m
        s = s - jnp.max(s, axis=-1, keepdims=True)
        p = jnp.exp(s)
        p = p * pl.reciprocal(jnp.sum(p, axis=-1, keepdims=True), approx=True)
        ctx = jnp.dot(p.astype(v.dtype), v,
                      preferred_element_type=jnp.float32)              # (S, dh)
        o_ref[:, i * dh:(i + 1) * dh] = ctx.astype(o_ref.dtype)


def attention(qkv, add_mask, nh, dh):
    """qkv: (B, S, 3H) fused projections laid out [Q | K | V] with heads as
    contiguous dh-wide column groups.  add_mask: (B, 1, S) additive, f32.
    Returns (B, S, H)."""
    B, S, H3 = qkv.shape
    H = nh * dh

    # Widest head group whose column slab is lane-dense (multiple of 128,
    # up to 256 wide to fill the 256-wide MXU on v6e/v7x).
    hb = 0
    for cand in range(nh, 0, -1):
        if nh % cand == 0 and cand * dh <= 256 and (cand * dh) % 128 == 0:
            hb = cand
            break

    if hb:  # read lane-aligned head-group column blocks straight from qkv
        ng = nh // hb
        w = hb * dh
        in_specs = [
            pl.BlockSpec((None, S, w), lambda b, h: (b, 0, h)),           # Q
            pl.BlockSpec((None, S, w), lambda b, h: (b, 0, ng + h)),      # K
            pl.BlockSpec((None, S, w), lambda b, h: (b, 0, 2 * ng + h)),  # V
        ]
        bases = (0, 0, 0)
    else:   # tiny models: full-width (S, 3H) block per batch, one head group
        hb, ng = nh, 1
        spec = pl.BlockSpec((None, S, H3), lambda b, h: (b, 0, 0))
        in_specs = [spec, spec, spec]
        bases = (0, H, 2 * H)

    mask_spec = pl.BlockSpec((None, 1, S), lambda b, h: (b, 0, 0))
    out_spec = pl.BlockSpec((None, S, hb * dh), lambda b, h: (b, 0, h))

    return pl.pallas_call(
        functools.partial(_attn_kernel, hb=hb, dh=dh,
                          bq=bases[0], bk=bases[1], bv=bases[2]),
        out_shape=jax.ShapeDtypeStruct((B, S, H), qkv.dtype),
        grid=(B, ng),
        in_specs=in_specs + [mask_spec],
        out_specs=out_spec,
        compiler_params=pltpu.CompilerParams(
            dimension_semantics=("parallel", "parallel"),
            vmem_limit_bytes=VMEM_LIMIT),
    )(qkv, qkv, qkv, add_mask)


# ----------------------------------------------------------------------------
# Kernel 6: classification head  sigmoid(fc(drop(tanh(pool(cls)))))
# ----------------------------------------------------------------------------
def _head_kernel(cls_ref, pw_ref, pb_ref, fw_ref, fb_ref, o_ref):
    pooled = jnp.tanh(
        jnp.dot(cls_ref[...], pw_ref[...], preferred_element_type=jnp.float32)
        + pb_ref[...])
    # TODO(synk): nn.Dropout(0.1) after the pooler is identity in eval mode.
    logits = (jnp.dot(pooled.astype(fw_ref.dtype), fw_ref[...],
                      preferred_element_type=jnp.float32) + fb_ref[...])
    o_ref[...] = jax.nn.sigmoid(logits)


def cls_head(cls_tok, pool_w, pool_b, fc_w, fc_b):
    B, H = cls_tok.shape
    C = fc_w.shape[1]
    return pl.pallas_call(
        _head_kernel,
        out_shape=jax.ShapeDtypeStruct((B, C), jnp.float32),
        in_specs=[pl.BlockSpec(memory_space=VMEM)] * 5,
        out_specs=pl.BlockSpec(memory_space=VMEM),
    )(cls_tok, pool_w, pool_b.reshape(1, H), fc_w, fc_b.reshape(1, C))


# ----------------------------------------------------------------------------
# Parameters (deterministic synthetic init — no checkpoint load)
# ----------------------------------------------------------------------------
def init_params(key, cfg):
    H, I, C = cfg["hidden"], cfg["intermediate"], cfg["class_num"]
    dh = H // cfg["num_heads"]
    wdt = COMPUTE_DTYPE

    def nrm(k, shape):
        return jax.random.normal(k, shape, dtype=jnp.float32) * 0.02

    keys = iter(jax.random.split(key, 128))
    p = dict(
        word_emb=nrm(next(keys), (cfg["vocab"], H)),
        pos_emb=nrm(next(keys), (cfg["max_pos"], H)),
        type_emb=nrm(next(keys), (cfg["type_vocab"], H)),
        emb_ln_g=jnp.ones((H,), jnp.float32),
        emb_ln_b=jnp.zeros((H,), jnp.float32),
        pool_w=nrm(next(keys), (H, H)).astype(wdt),
        pool_b=jnp.zeros((H,), jnp.float32),
        fc_w=nrm(next(keys), (H, C)).astype(wdt),
        fc_b=jnp.zeros((C,), jnp.float32),
        layers=[],
    )
    scale = 1.0 / math.sqrt(dh)
    for _ in range(cfg["num_layers"]):
        qkv_w = nrm(next(keys), (H, 3 * H))
        # Attention 1/sqrt(dh) scale folded into the Q projection (columns 0..H).
        qkv_w = qkv_w.at[:, :H].multiply(scale)
        qkv_b = jnp.zeros((3 * H,), jnp.float32)   # (scale fold is a no-op on 0 bias)
        p["layers"].append(dict(
            qkv_w=qkv_w.astype(wdt),               # [W_q*scale | W_k | W_v]
            qkv_b=qkv_b,
            o_w=nrm(next(keys), (H, H)).astype(wdt), o_b=jnp.zeros((H,), jnp.float32),
            ln1_g=jnp.ones((H,), jnp.float32), ln1_b=jnp.zeros((H,), jnp.float32),
            i_w=nrm(next(keys), (H, I)).astype(wdt), i_b=jnp.zeros((I,), jnp.float32),
            f_w=nrm(next(keys), (I, H)).astype(wdt), f_b=jnp.zeros((H,), jnp.float32),
            ln2_g=jnp.ones((H,), jnp.float32), ln2_b=jnp.zeros((H,), jnp.float32),
        ))
    return p


# ----------------------------------------------------------------------------
# Forward pass (BertMultiLabelCls.forward, eval mode)
# ----------------------------------------------------------------------------
def bert_multilabel_cls_forward(params, input_ids, attention_mask,
                                token_type_ids, cfg):
    B, S = input_ids.shape
    H, nh = cfg["hidden"], cfg["num_heads"]
    dh = H // nh
    M = B * S

    # Embeddings: gathers stay in XLA (glue); sum then Pallas LayerNorm (tiled).
    emb = (jnp.take(params["word_emb"], input_ids, axis=0)
           + params["pos_emb"][None, :S, :]
           + jnp.take(params["type_emb"], token_type_ids, axis=0))
    x = layernorm(emb.reshape(M, H), params["emb_ln_g"], params["emb_ln_b"])

    # BERT extended additive attention mask: (1 - mask) * -10000.
    add_mask = ((1.0 - attention_mask.astype(jnp.float32)) * -10000.0
                ).reshape(B, 1, S)

    # TODO(synk): for short sequences the per-pallas_call overhead dominates;
    # the QKV matmul and attention could be fused into one call via
    # pltpu.emit_pipeline if that becomes the bottleneck.
    for layer in params["layers"]:
        # Fused Q/K/V projection: one (H, 3H) matmul; attention reads its head
        # columns directly, so no reshape/transpose HBM pass.
        qkv = dense(x, layer["qkv_w"], layer["qkv_b"])            # (M, 3H)
        ctx = attention(qkv.reshape(B, S, 3 * H), add_mask, nh, dh)  # (B, S, H)
        # Attention output proj + residual + LN1, fused.
        x = matmul_add_ln(ctx.reshape(M, H), layer["o_w"], layer["o_b"],
                          x, layer["ln1_g"], layer["ln1_b"])
        # FFN + residual + LN2, fused; intermediate streamed in tI-wide slabs.
        x = ffn_ln(x, layer["i_w"], layer["i_b"], layer["f_w"], layer["f_b"],
                   layer["ln2_g"], layer["ln2_b"])

    # Pooler (tanh on [CLS]) + dropout(identity) + classifier + sigmoid, fused.
    cls_tok = x.reshape(B, S, H)[:, 0, :]
    return cls_head(cls_tok, params["pool_w"], params["pool_b"],
                    params["fc_w"], params["fc_b"])


if __name__ == "__main__":
    cfg = dict(hidden=32, num_heads=2, intermediate=64, num_layers=2,
               vocab=100, type_vocab=2, max_pos=64, class_num=5)
    root = jax.random.PRNGKey(0)
    pkey, ikey = jax.random.split(root)
    params = init_params(pkey, cfg)

    B, S = 2, 8
    input_ids = jax.random.randint(ikey, (B, S), 0, cfg["vocab"], dtype=jnp.int32)
    attention_mask = jnp.ones((B, S), dtype=jnp.int32)
    token_type_ids = jnp.zeros((B, S), dtype=jnp.int32)

    fwd = jax.jit(functools.partial(bert_multilabel_cls_forward, cfg=cfg))
    out = fwd(params, input_ids, attention_mask, token_type_ids)
    out = jax.block_until_ready(out)

    assert out.shape == (B, cfg["class_num"])
    assert bool(jnp.all(jnp.isfinite(out)))
    assert bool(jnp.all((out >= 0.0) & (out <= 1.0)))
    print("KERNEL_OK")
</pallas_src>

<mosaic_0001>
module attributes {stable_mosaic.version = 11 : i64} {
  func.func @_dense_kernel(%arg0: i32, %arg1: i32, %arg2: i32, %arg3: memref<16x32xbf16, #tpu.memory_space<vmem>>, %arg4: memref<32x96xbf16, #tpu.memory_space<vmem>>, %arg5: memref<1x96xf32, #tpu.memory_space<vmem>>, %arg6: memref<16x96xbf16, #tpu.memory_space<vmem>>, %arg7: memref<16x96xf32, #tpu.memory_space<vmem>>) attributes {dimension_semantics = [#tpu.dimension_semantics<parallel>, #tpu.dimension_semantics<parallel>, #tpu.dimension_semantics<arbitrary>], iteration_bounds = array<i64: 1, 1, 1>, scalar_prefetch = 0 : i64, scratch_operands = 1 : i64, tpu.core_type = #tpu.core_type<tc>, window_params = [{transform_indices = @transform_0, window_bounds = array<i64: 16, 32>}, {transform_indices = @transform_1, window_bounds = array<i64: 32, 96>}, {transform_indices = @transform_2, window_bounds = array<i64: 1, 96>}, {transform_indices = @transform_3, window_bounds = array<i64: 16, 96>}]} {
    %c0_i32 = arith.constant 0 : i32
    %0 = arith.cmpi eq, %arg2, %c0_i32 : i32
    %1 = arith.extui %0 : i1 to i32
    %c0_i32_0 = arith.constant 0 : i32
    %2 = arith.cmpi ne, %1, %c0_i32_0 : i32
    scf.if %2 {
      %cst_10 = arith.constant 0.000000e+00 : f32
      %12 = vector.broadcast %cst_10 : f32 to vector<16x96xf32>
      %c0_11 = arith.constant 0 : index
      %c0_12 = arith.constant 0 : index
      %13 = vector.load %arg7[%c0_11, %c0_12] : memref<16x96xf32, #tpu.memory_space<vmem>>, vector<16x96xf32>
      tpu.vector_store %arg7[%c0_11, %c0_12], %12 {strides = array<i32>} : memref<16x96xf32, #tpu.memory_space<vmem>>, vector<16x96xf32>,
    } else {
    }
    %c0 = arith.constant 0 : index
    %c0_1 = arith.constant 0 : index
    %3 = vector.load %arg7[%c0, %c0_1] : memref<16x96xf32, #tpu.memory_space<vmem>>, vector<16x96xf32>
    %c0_2 = arith.constant 0 : index
    %c0_3 = arith.constant 0 : index
    %4 = vector.load %arg3[%c0_2, %c0_3] : memref<16x32xbf16, #tpu.memory_space<vmem>>, vector<16x32xbf16>
    %c0_4 = arith.constant 0 : index
    %c0_5 = arith.constant 0 : index
    %5 = vector.load %arg4[%c0_4, %c0_5] : memref<32x96xbf16, #tpu.memory_space<vmem>>, vector<32x96xbf16>
    %cst = arith.constant dense<0.000000e+00> : vector<16x96xf32>
    %6 = tpu.matmul %4, %5, %cst {dimension_numbers = #tpu.dot_dimension_numbers<[1], [0], [0], [1], [0, 0, 1, 1], [], []>} : vector<16x32xbf16>, vector<32x96xbf16>, vector<16x96xf32> -> vector<16x96xf32>
    %7 = arith.addf %3, %6 : vector<16x96xf32>
    %c0_6 = arith.constant 0 : index
    %c0_7 = arith.constant 0 : index
    %8 = vector.load %arg7[%c0_6, %c0_7] : memref<16x96xf32, #tpu.memory_space<vmem>>, vector<16x96xf32>
    tpu.vector_store %arg7[%c0_6, %c0_7], %7 {strides = array<i32>} : memref<16x96xf32, #tpu.memory_space<vmem>>, vector<16x96xf32>,
    %c0_i32_8 = arith.constant 0 : i32
    %9 = arith.cmpi eq, %arg2, %c0_i32_8 : i32
    %10 = arith.extui %9 : i1 to i32
    %c0_i32_9 = arith.constant 0 : i32
    %11 = arith.cmpi ne, %10, %c0_i32_9 : i32
    scf.if %11 {
      %c0_10 = arith.constant 0 : index
      %c0_11 = arith.constant 0 : index
      %12 = vector.load %arg7[%c0_10, %c0_11] : memref<16x96xf32, #tpu.memory_space<vmem>>, vector<16x96xf32>
      %c0_12 = arith.constant 0 : index
      %c0_13 = arith.constant 0 : index
      %13 = vector.load %arg5[%c0_12, %c0_13] : memref<1x96xf32, #tpu.memory_space<vmem>>, vector<1x96xf32>
      %14 = vector.broadcast %13 : vector<1x96xf32> to vector<16x96xf32>
      %15 = arith.addf %12, %14 : vector<16x96xf32>
      %16 = arith.truncf %15 : vector<16x96xf32> to vector<16x96xbf16>
      %c0_14 = arith.constant 0 : index
      %c0_15 = arith.constant 0 : index
      %17 = vector.load %arg6[%c0_14, %c0_15] : memref<16x96xbf16, #tpu.memory_space<vmem>>, vector<16x96xbf16>
      tpu.vector_store %arg6[%c0_14, %c0_15], %16 {strides = array<i32>} : memref<16x96xbf16, #tpu.memory_space<vmem>>, vector<16x96xbf16>,
    } else {
    }
    return
  }
  func.func @transform_0(%arg0: i32, %arg1: i32, %arg2: i32) -> (i32, i32) {
    %c0_i32 = arith.constant 0 : i32
    return %arg0, %arg2 : i32, i32
  }
  func.func @transform_1(%arg0: i32, %arg1: i32, %arg2: i32) -> (i32, i32) {
    %c0_i32 = arith.constant 0 : i32
    return %arg2, %arg1 : i32, i32
  }
  func.func @transform_2(%arg0: i32, %arg1: i32, %arg2: i32) -> (i32, i32) {
    %c0_i32 = arith.constant 0 : i32
    %c0_i32_0 = arith.constant 0 : i32
    return %c0_i32, %arg1 : i32, i32
  }
  func.func @transform_3(%arg0: i32, %arg1: i32, %arg2: i32) -> (i32, i32) {
    %c0_i32 = arith.constant 0 : i32
    return %arg0, %arg1 : i32, i32
  }
}

module attributes {stable_mosaic.version = 11 : i64} {
  func.func @_ln_kernel(%arg0: i32, %arg1: memref<16x32xf32, #tpu.memory_space<vmem>>, %arg2: memref<1x32xf32, #tpu.memory_space<vmem>>, %arg3: memref<1x32xf32, #tpu.memory_space<vmem>>, %arg4: memref<16x32xbf16, #tpu.memory_space<vmem>>) attributes {dimension_semantics = [#tpu.dimension_semantics<parallel>], iteration_bounds = array<i64: 1>, scalar_prefetch = 0 : i64, scratch_operands = 0 : i64, tpu.core_type = #tpu.core_type<tc>, window_params = [{transform_indices = @transform_0, window_bounds = array<i64: 16, 32>}, {pipeline_mode = #tpu.pipeline_mode<synchronous>, transform_indices = @transform_1, window_bounds = array<i64: 1, 32>}, {pipeline_mode = #tpu.pipeline_mode<synchronous>, transform_indices = @transform_2, window_bounds = array<i64: 1, 32>}, {transform_indices = @transform_3, window_bounds = array<i64: 16, 32>}]} {
    %c0 = arith.constant 0 : index
    %c0_0 = arith.constant 0 : index
    %0 = vector.load %arg1[%c0, %c0_0] : memref<16x32xf32, #tpu.memory_space<vmem>>, vector<16x32xf32>
    %c0_1 = arith.constant 0 : index
    %c0_2 = arith.constant 0 : index
    %1 = vector.load %arg2[%c0_1, %c0_2] : memref<1x32xf32, #tpu.memory_space<vmem>>, vector<1x32xf32>
    %c0_3 = arith.constant 0 : index
    %c0_4 = arith.constant 0 : index
    %2 = vector.load %arg3[%c0_3, %c0_4] : memref<1x32xf32, #tpu.memory_space<vmem>>, vector<1x32xf32>
    %cst = arith.constant dense<0.000000e+00> : vector<16xf32>
    %3 = vector.multi_reduction <add>, %0, %cst [1] : vector<16x32xf32> to vector<16xf32>
    %4 = vector.shape_cast %3 : vector<16xf32> to vector<16x1xf32>
    %cst_5 = arith.constant 3.200000e+01 : f32
    %5 = vector.broadcast %cst_5 : f32 to vector<16x1xf32>
    %6 = arith.divf %4, %5 : vector<16x1xf32>
    %7 = vector.broadcast %6 : vector<16x1xf32> to vector<16x32xf32>
    %8 = arith.subf %0, %7 : vector<16x32xf32>
    %9 = arith.mulf %8, %8 : vector<16x32xf32>
    %cst_6 = arith.constant dense<0.000000e+00> : vector<16xf32>
    %10 = vector.multi_reduction <add>, %9, %cst_6 [1] : vector<16x32xf32> to vector<16xf32>
    %11 = vector.shape_cast %10 : vector<16xf32> to vector<16x1xf32>
    %cst_7 = arith.constant 3.200000e+01 : f32
    %12 = vector.broadcast %cst_7 : f32 to vector<16x1xf32>
    %13 = arith.divf %11, %12 : vector<16x1xf32>
    %14 = vector.broadcast %6 : vector<16x1xf32> to vector<16x32xf32>
    %15 = arith.subf %0, %14 : vector<16x32xf32>
    %cst_8 = arith.constant 9.99999996E-13 : f32
    %16 = vector.broadcast %cst_8 : f32 to vector<16x1xf32>
    %17 = arith.addf %13, %16 : vector<16x1xf32>
    %18 = math.rsqrt %17 : vector<16x1xf32>
    %19 = vector.broadcast %18 : vector<16x1xf32> to vector<16x32xf32>
    %20 = arith.mulf %15, %19 : vector<16x32xf32>
    %21 = vector.broadcast %1 : vector<1x32xf32> to vector<16x32xf32>
    %22 = arith.mulf %20, %21 : vector<16x32xf32>
    %23 = vector.broadcast %2 : vector<1x32xf32> to vector<16x32xf32>
    %24 = arith.addf %22, %23 : vector<16x32xf32>
    %25 = arith.truncf %24 : vector<16x32xf32> to vector<16x32xbf16>
    %c0_9 = arith.constant 0 : index
    %c0_10 = arith.constant 0 : index
    %26 = vector.load %arg4[%c0_9, %c0_10] : memref<16x32xbf16, #tpu.memory_space<vmem>>, vector<16x32xbf16>
    tpu.vector_store %arg4[%c0_9, %c0_10], %25 {strides = array<i32>} : memref<16x32xbf16, #tpu.memory_space<vmem>>, vector<16x32xbf16>,
    return
  }
  func.func @transform_0(%arg0: i32) -> (i32, i32) {
    %c0_i32 = arith.constant 0 : i32
    %c0_i32_0 = arith.constant 0 : i32
    return %arg0, %c0_i32 : i32, i32
  }
  func.func @transform_1(%arg0: i32) -> (i32, i32) {
    %c0_i32 = arith.constant 0 : i32
    %c0_i32_0 = arith.constant 0 : i32
    %c0_i32_1 = arith.constant 0 : i32
    return %c0_i32, %c0_i32_0 : i32, i32
  }
  func.func @transform_2(%arg0: i32) -> (i32, i32) {
    %c0_i32 = arith.constant 0 : i32
    %c0_i32_0 = arith.constant 0 : i32
    %c0_i32_1 = arith.constant 0 : i32
    return %c0_i32, %c0_i32_0 : i32, i32
  }
  func.func @transform_3(%arg0: i32) -> (i32, i32) {
    %c0_i32 = arith.constant 0 : i32
    %c0_i32_0 = arith.constant 0 : i32
    return %arg0, %c0_i32 : i32, i32
  }
}

module attributes {stable_mosaic.version = 11 : i64} {
  func.func @_matmul_add_ln_kernel(%arg0: i32, %arg1: memref<16x32xbf16, #tpu.memory_space<vmem>>, %arg2: memref<32x32xbf16, #tpu.memory_space<vmem>>, %arg3: memref<1x32xf32, #tpu.memory_space<vmem>>, %arg4: memref<16x32xbf16, #tpu.memory_space<vmem>>, %arg5: memref<1x32xf32, #tpu.memory_space<vmem>>, %arg6: memref<1x32xf32, #tpu.memory_space<vmem>>, %arg7: memref<16x32xbf16, #tpu.memory_space<vmem>>) attributes {dimension_semantics = [#tpu.dimension_semantics<parallel>], iteration_bounds = array<i64: 1>, scalar_prefetch = 0 : i64, scratch_operands = 0 : i64, tpu.core_type = #tpu.core_type<tc>, window_params = [{transform_indices = @transform_0, window_bounds = array<i64: 16, 32>}, {pipeline_mode = #tpu.pipeline_mode<synchronous>, transform_indices = @transform_1, window_bounds = array<i64: 32, 32>}, {pipeline_mode = #tpu.pipeline_mode<synchronous>, transform_indices = @transform_2, window_bounds = array<i64: 1, 32>}, {transform_indices = @transform_3, window_bounds = array<i64: 16, 32>}, {pipeline_mode = #tpu.pipeline_mode<synchronous>, transform_indices = @transform_4, window_bounds = array<i64: 1, 32>}, {pipeline_mode = #tpu.pipeline_mode<synchronous>, transform_indices = @transform_5, window_bounds = array<i64: 1, 32>}, {transform_indices = @transform_6, window_bounds = array<i64: 16, 32>}]} {
    %c0 = arith.constant 0 : index
    %c0_0 = arith.constant 0 : index
    %0 = vector.load %arg1[%c0, %c0_0] : memref<16x32xbf16, #tpu.memory_space<vmem>>, vector<16x32xbf16>
    %c0_1 = arith.constant 0 : index
    %c0_2 = arith.constant 0 : index
    %1 = vector.load %arg2[%c0_1, %c0_2] : memref<32x32xbf16, #tpu.memory_space<vmem>>, vector<32x32xbf16>
    %cst = arith.constant dense<0.000000e+00> : vector<16x32xf32>
    %2 = tpu.matmul %0, %1, %cst {dimension_numbers = #tpu.dot_dimension_numbers<[1], [0], [0], [1], [0, 0, 1, 1], [], []>} : vector<16x32xbf16>, vector<32x32xbf16>, vector<16x32xf32> -> vector<16x32xf32>
    %c0_3 = arith.constant 0 : index
    %c0_4 = arith.constant 0 : index
    %3 = vector.load %arg3[%c0_3, %c0_4] : memref<1x32xf32, #tpu.memory_space<vmem>>, vector<1x32xf32>
    %4 = vector.broadcast %3 : vector<1x32xf32> to vector<16x32xf32>
    %5 = arith.addf %2, %4 : vector<16x32xf32>
    %c0_5 = arith.constant 0 : index
    %c0_6 = arith.constant 0 : index
    %6 = vector.load %arg4[%c0_5, %c0_6] : memref<16x32xbf16, #tpu.memory_space<vmem>>, vector<16x32xbf16>
    %7 = arith.extf %6 : vector<16x32xbf16> to vector<16x32xf32>
    %8 = arith.addf %5, %7 : vector<16x32xf32>
    %c0_7 = arith.constant 0 : index
    %c0_8 = arith.constant 0 : index
    %9 = vector.load %arg5[%c0_7, %c0_8] : memref<1x32xf32, #tpu.memory_space<vmem>>, vector<1x32xf32>
    %c0_9 = arith.constant 0 : index
    %c0_10 = arith.constant 0 : index
    %10 = vector.load %arg6[%c0_9, %c0_10] : memref<1x32xf32, #tpu.memory_space<vmem>>, vector<1x32xf32>
    %cst_11 = arith.constant dense<0.000000e+00> : vector<16xf32>
    %11 = vector.multi_reduction <add>, %8, %cst_11 [1] : vector<16x32xf32> to vector<16xf32>
    %12 = vector.shape_cast %11 : vector<16xf32> to vector<16x1xf32>
    %cst_12 = arith.constant 3.200000e+01 : f32
    %13 = vector.broadcast %cst_12 : f32 to vector<16x1xf32>
    %14 = arith.divf %12, %13 : vector<16x1xf32>
    %15 = vector.broadcast %14 : vector<16x1xf32> to vector<16x32xf32>
    %16 = arith.subf %8, %15 : vector<16x32xf32>
    %17 = arith.mulf %16, %16 : vector<16x32xf32>
    %cst_13 = arith.constant dense<0.000000e+00> : vector<16xf32>
    %18 = vector.multi_reduction <add>, %17, %cst_13 [1] : vector<16x32xf32> to vector<16xf32>
    %19 = vector.shape_cast %18 : vector<16xf32> to vector<16x1xf32>
    %cst_14 = arith.constant 3.200000e+01 : f32
    %20 = vector.broadcast %cst_14 : f32 to vector<16x1xf32>
    %21 = arith.divf %19, %20 : vector<16x1xf32>
    %22 = vector.broadcast %14 : vector<16x1xf32> to vector<16x32xf32>
    %23 = arith.subf %8, %22 : vector<16x32xf32>
    %cst_15 = arith.constant 9.99999996E-13 : f32
    %24 = vector.broadcast %cst_15 : f32 to vector<16x1xf32>
    %25 = arith.addf %21, %24 : vector<16x1xf32>
    %26 = math.rsqrt %25 : vector<16x1xf32>
    %27 = vector.broadcast %26 : vector<16x1xf32> to vector<16x32xf32>
    %28 = arith.mulf %23, %27 : vector<16x32xf32>
    %29 = vector.broadcast %9 : vector<1x32xf32> to vector<16x32xf32>
    %30 = arith.mulf %28, %29 : vector<16x32xf32>
    %31 = vector.broadcast %10 : vector<1x32xf32> to vector<16x32xf32>
    %32 = arith.addf %30, %31 : vector<16x32xf32>
    %33 = arith.truncf %32 : vector<16x32xf32> to vector<16x32xbf16>
    %c0_16 = arith.constant 0 : index
    %c0_17 = arith.constant 0 : index
    %34 = vector.load %arg7[%c0_16, %c0_17] : memref<16x32xbf16, #tpu.memory_space<vmem>>, vector<16x32xbf16>
    tpu.vector_store %arg7[%c0_16, %c0_17], %33 {strides = array<i32>} : memref<16x32xbf16, #tpu.memory_space<vmem>>, vector<16x32xbf16>,
    return
  }
  func.func @transform_0(%arg0: i32) -> (i32, i32) {
    %c0_i32 = arith.constant 0 : i32
    %c0_i32_0 = arith.constant 0 : i32
    return %arg0, %c0_i32 : i32, i32
  }
  func.func @transform_1(%arg0: i32) -> (i32, i32) {
    %c0_i32 = arith.constant 0 : i32
    %c0_i32_0 = arith.constant 0 : i32
    %c0_i32_1 = arith.constant 0 : i32
    return %c0_i32, %c0_i32_0 : i32, i32
  }
  func.func @transform_2(%arg0: i32) -> (i32, i32) {
    %c0_i32 = arith.constant 0 : i32
    %c0_i32_0 = arith.constant 0 : i32
    %c0_i32_1 = arith.constant 0 : i32
    return %c0_i32, %c0_i32_0 : i32, i32
  }
  func.func @transform_3(%arg0: i32) -> (i32, i32) {
    %c0_i32 = arith.constant 0 : i32
    %c0_i32_0 = arith.constant 0 : i32
    return %arg0, %c0_i32 : i32, i32
  }
  func.func @transform_4(%arg0: i32) -> (i32, i32) {
    %c0_i32 = arith.constant 0 : i32
    %c0_i32_0 = arith.constant 0 : i32
    %c0_i32_1 = arith.constant 0 : i32
    return %c0_i32, %c0_i32_0 : i32, i32
  }
  func.func @transform_5(%arg0: i32) -> (i32, i32) {
    %c0_i32 = arith.constant 0 : i32
    %c0_i32_0 = arith.constant 0 : i32
    %c0_i32_1 = arith.constant 0 : i32
    return %c0_i32, %c0_i32_0 : i32, i32
  }
  func.func @transform_6(%arg0: i32) -> (i32, i32) {
    %c0_i32 = arith.constant 0 : i32
    %c0_i32_0 = arith.constant 0 : i32
    return %arg0, %c0_i32 : i32, i32
  }
}

module attributes {stable_mosaic.version = 11 : i64} {
  func.func @_attn_kernel(%arg0: i32, %arg1: i32, %arg2: memref<1x8x96xbf16, #tpu.memory_space<vmem>>, %arg3: memref<1x8x96xbf16, #tpu.memory_space<vmem>>, %arg4: memref<1x8x96xbf16, #tpu.memory_space<vmem>>, %arg5: memref<1x1x8xf32, #tpu.memory_space<vmem>>, %arg6: memref<1x8x32xbf16, #tpu.memory_space<vmem>>) attributes {dimension_semantics = [#tpu.dimension_semantics<parallel>, #tpu.dimension_semantics<parallel>], iteration_bounds = array<i64: 2, 1>, scalar_prefetch = 0 : i64, scratch_operands = 0 : i64, tpu.core_type = #tpu.core_type<tc>, window_params = [{transform_indices = @transform_0, window_bounds = array<i64: 1, 8, 96>}, {transform_indices = @transform_1, window_bounds = array<i64: 1, 8, 96>}, {transform_indices = @transform_2, window_bounds = array<i64: 1, 8, 96>}, {transform_indices = @transform_3, window_bounds = array<i64: 1, 1, 8>}, {transform_indices = @transform_4, window_bounds = array<i64: 1, 8, 32>}]} {
    %c0 = arith.constant 0 : index
    %c0_0 = arith.constant 0 : index
    %c0_1 = arith.constant 0 : index
    %0 = vector.load %arg5[%c0, %c0_0, %c0_1] : memref<1x1x8xf32, #tpu.memory_space<vmem>>, vector<1x1x8xf32>
    %1 = vector.shape_cast %0 : vector<1x1x8xf32> to vector<1x8xf32>
    %c0_2 = arith.constant 0 : index
    %c0_3 = arith.constant 0 : index
    %c0_4 = arith.constant 0 : index
    %2 = vector.load %arg2[%c0_2, %c0_3, %c0_4] : memref<1x8x96xbf16, #tpu.memory_space<vmem>>, vector<1x8x16xbf16>
    %3 = vector.shape_cast %2 : vector<1x8x16xbf16> to vector<8x16xbf16>
    %c0_5 = arith.constant 0 : index
    %c0_6 = arith.constant 0 : index
    %c32 = arith.constant 32 : index
    %4 = vector.load %arg3[%c0_5, %c0_6, %c32] : memref<1x8x96xbf16, #tpu.memory_space<vmem>>, vector<1x8x16xbf16>
    %5 = vector.shape_cast %4 : vector<1x8x16xbf16> to vector<8x16xbf16>
    %c0_7 = arith.constant 0 : index
    %c0_8 = arith.constant 0 : index
    %c64 = arith.constant 64 : index
    %6 = vector.load %arg4[%c0_7, %c0_8, %c64] : memref<1x8x96xbf16, #tpu.memory_space<vmem>>, vector<1x8x16xbf16>
    %7 = vector.shape_cast %6 : vector<1x8x16xbf16> to vector<8x16xbf16>
    %cst = arith.constant dense<0.000000e+00> : vector<8x8xf32>
    %8 = tpu.matmul %3, %5, %cst {dimension_numbers = #tpu.dot_dimension_numbers<[1], [1], [0], [0], [0, 0, 1, 0], [], []>} : vector<8x16xbf16>, vector<8x16xbf16>, vector<8x8xf32> -> vector<8x8xf32>
    %9 = vector.broadcast %1 : vector<1x8xf32> to vector<8x8xf32>
    %10 = arith.addf %8, %9 : vector<8x8xf32>
    %cst_9 = arith.constant dense<0xFF800000> : vector<8xf32>
    %11 = vector.multi_reduction <maximumf>, %10, %cst_9 [1] : vector<8x8xf32> to vector<8xf32>
    %12 = vector.shape_cast %11 : vector<8xf32> to vector<8x1xf32>
    %13 = vector.broadcast %12 : vector<8x1xf32> to vector<8x8xf32>
    %14 = arith.subf %10, %13 : vector<8x8xf32>
    %15 = math.exp %14 : vector<8x8xf32>
    %cst_10 = arith.constant dense<0.000000e+00> : vector<8xf32>
    %16 = vector.multi_reduction <add>, %15, %cst_10 [1] : vector<8x8xf32> to vector<8xf32>
    %17 = vector.shape_cast %16 : vector<8xf32> to vector<8x1xf32>
    %18 = tpu.reciprocal %17 {approx = true} : vector<8x1xf32> -> vector<8x1xf32>
    %19 = vector.broadcast %18 : vector<8x1xf32> to vector<8x8xf32>
    %20 = arith.mulf %15, %19 : vector<8x8xf32>
    %21 = arith.truncf %20 : vector<8x8xf32> to vector<8x8xbf16>
    %cst_11 = arith.constant dense<0.000000e+00> : vector<8x16xf32>
    %22 = tpu.matmul %21, %7, %cst_11 {dimension_numbers = #tpu.dot_dimension_numbers<[1], [0], [0], [1], [0, 0, 1, 1], [], []>} : vector<8x8xbf16>, vector<8x16xbf16>, vector<8x16xf32> -> vector<8x16xf32>
    %23 = arith.truncf %22 : vector<8x16xf32> to vector<8x16xbf16>
    %c0_12 = arith.constant 0 : index
    %c0_13 = arith.constant 0 : index
    %c0_14 = arith.constant 0 : index
    %24 = vector.load %arg6[%c0_12, %c0_13, %c0_14] : memref<1x8x32xbf16, #tpu.memory_space<vmem>>, vector<1x8x16xbf16>
    %25 = vector.shape_cast %24 : vector<1x8x16xbf16> to vector<8x16xbf16>
    %26 = vector.shape_cast %23 : vector<8x16xbf16> to vector<1x8x16xbf16>
    tpu.vector_store %arg6[%c0_12, %c0_13, %c0_14], %26 {strides = array<i32>} : memref<1x8x32xbf16, #tpu.memory_space<vmem>>, vector<1x8x16xbf16>,
    %c0_15 = arith.constant 0 : index
    %c0_16 = arith.constant 0 : index
    %c16 = arith.constant 16 : index
    %27 = vector.load %arg2[%c0_15, %c0_16, %c16] : memref<1x8x96xbf16, #tpu.memory_space<vmem>>, vector<1x8x16xbf16>
    %28 = vector.shape_cast %27 : vector<1x8x16xbf16> to vector<8x16xbf16>
    %c0_17 = arith.constant 0 : index
    %c0_18 = arith.constant 0 : index
    %c48 = arith.constant 48 : index
    %29 = vector.load %arg3[%c0_17, %c0_18, %c48] : memref<1x8x96xbf16, #tpu.memory_space<vmem>>, vector<1x8x16xbf16>
    %30 = vector.shape_cast %29 : vector<1x8x16xbf16> to vector<8x16xbf16>
    %c0_19 = arith.constant 0 : index
    %c0_20 = arith.constant 0 : index
    %c80 = arith.constant 80 : index
    %31 = vector.load %arg4[%c0_19, %c0_20, %c80] : memref<1x8x96xbf16, #tpu.memory_space<vmem>>, vector<1x8x16xbf16>
    %32 = vector.shape_cast %31 : vector<1x8x16xbf16> to vector<8x16xbf16>
    %cst_21 = arith.constant dense<0.000000e+00> : vector<8x8xf32>
    %33 = tpu.matmul %28, %30, %cst_21 {dimension_numbers = #tpu.dot_dimension_numbers<[1], [1], [0], [0], [0, 0, 1, 0], [], []>} : vector<8x16xbf16>, vector<8x16xbf16>, vector<8x8xf32> -> vector<8x8xf32>
    %34 = vector.broadcast %1 : vector<1x8xf32> to vector<8x8xf32>
    %35 = arith.addf %33, %34 : vector<8x8xf32>
    %cst_22 = arith.constant dense<0xFF800000> : vector<8xf32>
    %36 = vector.multi_reduction <maximumf>, %35, %cst_22 [1] : vector<8x8xf32> to vector<8xf32>
    %37 = vector.shape_cast %36 : vector<8xf32> to vector<8x1xf32>
    %38 = vector.broadcast %37 : vector<8x1xf32> to vector<8x8xf32>
    %39 = arith.subf %35, %38 : vector<8x8xf32>
    %40 = math.exp %39 : vector<8x8xf32>
    %cst_23 = arith.constant dense<0.000000e+00> : vector<8xf32>
    %41 = vector.multi_reduction <add>, %40, %cst_23 [1] : vector<8x8xf32> to vector<8xf32>
    %42 = vector.shape_cast %41 : vector<8xf32> to vector<8x1xf32>
    %43 = tpu.reciprocal %42 {approx = true} : vector<8x1xf32> -> vector<8x1xf32>
    %44 = vector.broadcast %43 : vector<8x1xf32> to vector<8x8xf32>
    %45 = arith.mulf %40, %44 : vector<8x8xf32>
    %46 = arith.truncf %45 : vector<8x8xf32> to vector<8x8xbf16>
    %cst_24 = arith.constant dense<0.000000e+00> : vector<8x16xf32>
    %47 = tpu.matmul %46, %32, %cst_24 {dimension_numbers = #tpu.dot_dimension_numbers<[1], [0], [0], [1], [0, 0, 1, 1], [], []>} : vector<8x8xbf16>, vector<8x16xbf16>, vector<8x16xf32> -> vector<8x16xf32>
    %48 = arith.truncf %47 : vector<8x16xf32> to vector<8x16xbf16>
    %c0_25 = arith.constant 0 : index
    %c0_26 = arith.constant 0 : index
    %c16_27 = arith.constant 16 : index
    %49 = vector.load %arg6[%c0_25, %c0_26, %c16_27] : memref<1x8x32xbf16, #tpu.memory_space<vmem>>, vector<1x8x16xbf16>
    %50 = vector.shape_cast %49 : vector<1x8x16xbf16> to vector<8x16xbf16>
    %51 = vector.shape_cast %48 : vector<8x16xbf16> to vector<1x8x16xbf16>
    tpu.vector_store %arg6[%c0_25, %c0_26, %c16_27], %51 {strides = array<i32>} : memref<1x8x32xbf16, #tpu.memory_space<vmem>>, vector<1x8x16xbf16>,
    return
  }
  func.func @transform_0(%arg0: i32, %arg1: i32) -> (i32, i32, i32) {
    %c0_i32 = arith.constant 0 : i32
    %c0_i32_0 = arith.constant 0 : i32
    %c0_i32_1 = arith.constant 0 : i32
    return %arg0, %c0_i32, %c0_i32_0 : i32, i32, i32
  }
  func.func @transform_1(%arg0: i32, %arg1: i32) -> (i32, i32, i32) {
    %c0_i32 = arith.constant 0 : i32
    %c0_i32_0 = arith.constant 0 : i32
    %c0_i32_1 = arith.constant 0 : i32
    return %arg0, %c0_i32, %c0_i32_0 : i32, i32, i32
  }
  func.func @transform_2(%arg0: i32, %arg1: i32) -> (i32, i32, i32) {
    %c0_i32 = arith.constant 0 : i32
    %c0_i32_0 = arith.constant 0 : i32
    %c0_i32_1 = arith.constant 0 : i32
    return %arg0, %c0_i32, %c0_i32_0 : i32, i32, i32
  }
  func.func @transform_3(%arg0: i32, %arg1: i32) -> (i32, i32, i32) {
    %c0_i32 = arith.constant 0 : i32
    %c0_i32_0 = arith.constant 0 : i32
    %c0_i32_1 = arith.constant 0 : i32
    return %arg0, %c0_i32, %c0_i32_0 : i32, i32, i32
  }
  func.func @transform_4(%arg0: i32, %arg1: i32) -> (i32, i32, i32) {
    %c0_i32 = arith.constant 0 : i32
    %c0_i32_0 = arith.constant 0 : i32
    return %arg0, %c0_i32, %arg1 : i32, i32, i32
  }
}

module attributes {stable_mosaic.version = 11 : i64} {
  func.func @_ffn_ln_kernel(%arg0: i32, %arg1: i32, %arg2: memref<16x32xbf16, #tpu.memory_space<vmem>>, %arg3: memref<32x64xbf16, #tpu.memory_space<vmem>>, %arg4: memref<1x64xf32, #tpu.memory_space<vmem>>, %arg5: memref<64x32xbf16, #tpu.memory_space<vmem>>, %arg6: memref<1x32xf32, #tpu.memory_space<vmem>>, %arg7: memref<1x32xf32, #tpu.memory_space<vmem>>, %arg8: memref<1x32xf32, #tpu.memory_space<vmem>>, %arg9: memref<16x32xbf16, #tpu.memory_space<vmem>>, %arg10: memref<16x32xf32, #tpu.memory_space<vmem>>) attributes {dimension_semantics = [#tpu.dimension_semantics<parallel>, #tpu.dimension_semantics<arbitrary>], iteration_bounds = array<i64: 1, 1>, scalar_prefetch = 0 : i64, scratch_operands = 1 : i64, tpu.core_type = #tpu.core_type<tc>, window_params = [{transform_indices = @transform_0, window_bounds = array<i64: 16, 32>}, {transform_indices = @transform_1, window_bounds = array<i64: 32, 64>}, {transform_indices = @transform_2, window_bounds = array<i64: 1, 64>}, {transform_indices = @transform_3, window_bounds = array<i64: 64, 32>}, {pipeline_mode = #tpu.pipeline_mode<synchronous>, transform_indices = @transform_4, window_bounds = array<i64: 1, 32>}, {pipeline_mode = #tpu.pipeline_mode<synchronous>, transform_indices = @transform_5, window_bounds = array<i64: 1, 32>}, {pipeline_mode = #tpu.pipeline_mode<synchronous>, transform_indices = @transform_6, window_bounds = array<i64: 1, 32>}, {transform_indices = @transform_7, window_bounds = array<i64: 16, 32>}]} {
    %c0_i32 = arith.constant 0 : i32
    %0 = arith.cmpi eq, %arg1, %c0_i32 : i32
    %1 = arith.extui %0 : i1 to i32
    %c0_i32_0 = arith.constant 0 : i32
    %2 = arith.cmpi ne, %1, %c0_i32_0 : i32
    scf.if %2 {
      %cst_19 = arith.constant 0.000000e+00 : f32
      %31 = vector.broadcast %cst_19 : f32 to vector<16x32xf32>
      %c0_20 = arith.constant 0 : index
      %c0_21 = arith.constant 0 : index
      %32 = vector.load %arg10[%c0_20, %c0_21] : memref<16x32xf32, #tpu.memory_space<vmem>>, vector<16x32xf32>
      tpu.vector_store %arg10[%c0_20, %c0_21], %31 {strides = array<i32>} : memref<16x32xf32, #tpu.memory_space<vmem>>, vector<16x32xf32>,
    } else {
    }
    %c0 = arith.constant 0 : index
    %c0_1 = arith.constant 0 : index
    %3 = vector.load %arg2[%c0, %c0_1] : memref<16x32xbf16, #tpu.memory_space<vmem>>, vector<16x32xbf16>
    %c0_2 = arith.constant 0 : index
    %c0_3 = arith.constant 0 : index
    %4 = vector.load %arg3[%c0_2, %c0_3] : memref<32x64xbf16, #tpu.memory_space<vmem>>, vector<32x64xbf16>
    %cst = arith.constant dense<0.000000e+00> : vector<16x64xf32>
    %5 = tpu.matmul %3, %4, %cst {dimension_numbers = #tpu.dot_dimension_numbers<[1], [0], [0], [1], [0, 0, 1, 1], [], []>} : vector<16x32xbf16>, vector<32x64xbf16>, vector<16x64xf32> -> vector<16x64xf32>
    %c0_4 = arith.constant 0 : index
    %c0_5 = arith.constant 0 : index
    %6 = vector.load %arg4[%c0_4, %c0_5] : memref<1x64xf32, #tpu.memory_space<vmem>>, vector<1x64xf32>
    %7 = vector.broadcast %6 : vector<1x64xf32> to vector<16x64xf32>
    %8 = arith.addf %5, %7 : vector<16x64xf32>
    %9 = arith.mulf %8, %8 : vector<16x64xf32>
    %10 = arith.mulf %8, %9 : vector<16x64xf32>
    %cst_6 = arith.constant 4.471500e-02 : f32
    %11 = vector.broadcast %cst_6 : f32 to vector<16x64xf32>
    %12 = arith.mulf %11, %10 : vector<16x64xf32>
    %13 = arith.addf %8, %12 : vector<16x64xf32>
    %cst_7 = arith.constant 0.797884583 : f32
    %14 = vector.broadcast %cst_7 : f32 to vector<16x64xf32>
    %15 = arith.mulf %14, %13 : vector<16x64xf32>
    %16 = math.tanh %15 : vector<16x64xf32>
    %cst_8 = arith.constant 1.000000e+00 : f32
    %17 = vector.broadcast %cst_8 : f32 to vector<16x64xf32>
    %18 = arith.addf %17, %16 : vector<16x64xf32>
    %cst_9 = arith.constant 5.000000e-01 : f32
    %19 = vector.broadcast %cst_9 : f32 to vector<16x64xf32>
    %20 = arith.mulf %19, %18 : vector<16x64xf32>
    %21 = arith.mulf %8, %20 : vector<16x64xf32>
    %c0_10 = arith.constant 0 : index
    %c0_11 = arith.constant 0 : index
    %22 = vector.load %arg10[%c0_10, %c0_11] : memref<16x32xf32, #tpu.memory_space<vmem>>, vector<16x32xf32>
    %23 = arith.truncf %21 : vector<16x64xf32> to vector<16x64xbf16>
    %c0_12 = arith.constant 0 : index
    %c0_13 = arith.constant 0 : index
    %24 = vector.load %arg5[%c0_12, %c0_13] : memref<64x32xbf16, #tpu.memory_space<vmem>>, vector<64x32xbf16>
    %cst_14 = arith.constant dense<0.000000e+00> : vector<16x32xf32>
    %25 = tpu.matmul %23, %24, %cst_14 {dimension_numbers = #tpu.dot_dimension_numbers<[1], [0], [0], [1], [0, 0, 1, 1], [], []>} : vector<16x64xbf16>, vector<64x32xbf16>, vector<16x32xf32> -> vector<16x32xf32>
    %26 = arith.addf %22, %25 : vector<16x32xf32>
    %c0_15 = arith.constant 0 : index
    %c0_16 = arith.constant 0 : index
    %27 = vector.load %arg10[%c0_15, %c0_16] : memref<16x32xf32, #tpu.memory_space<vmem>>, vector<16x32xf32>
    tpu.vector_store %arg10[%c0_15, %c0_16], %26 {strides = array<i32>} : memref<16x32xf32, #tpu.memory_space<vmem>>, vector<16x32xf32>,
    %c0_i32_17 = arith.constant 0 : i32
    %28 = arith.cmpi eq, %arg1, %c0_i32_17 : i32
    %29 = arith.extui %28 : i1 to i32
    %c0_i32_18 = arith.constant 0 : i32
    %30 = arith.cmpi ne, %29, %c0_i32_18 : i32
    scf.if %30 {
      %c0_19 = arith.constant 0 : index
      %c0_20 = arith.constant 0 : index
      %31 = vector.load %arg10[%c0_19, %c0_20] : memref<16x32xf32, #tpu.memory_space<vmem>>, vector<16x32xf32>
      %c0_21 = arith.constant 0 : index
      %c0_22 = arith.constant 0 : index
      %32 = vector.load %arg6[%c0_21, %c0_22] : memref<1x32xf32, #tpu.memory_space<vmem>>, vector<1x32xf32>
      %33 = vector.broadcast %32 : vector<1x32xf32> to vector<16x32xf32>
      %34 = arith.addf %31, %33 : vector<16x32xf32>
      %35 = arith.extf %3 : vector<16x32xbf16> to vector<16x32xf32>
      %36 = arith.addf %34, %35 : vector<16x32xf32>
      %c0_23 = arith.constant 0 : index
      %c0_24 = arith.constant 0 : index
      %37 = vector.load %arg7[%c0_23, %c0_24] : memref<1x32xf32, #tpu.memory_space<vmem>>, vector<1x32xf32>
      %c0_25 = arith.constant 0 : index
      %c0_26 = arith.constant 0 : index
      %38 = vector.load %arg8[%c0_25, %c0_26] : memref<1x32xf32, #tpu.memory_space<vmem>>, vector<1x32xf32>
      %cst_27 = arith.constant dense<0.000000e+00> : vector<16xf32>
      %39 = vector.multi_reduction <add>, %36, %cst_27 [1] : vector<16x32xf32> to vector<16xf32>
      %40 = vector.shape_cast %39 : vector<16xf32> to vector<16x1xf32>
      %cst_28 = arith.constant 3.200000e+01 : f32
      %41 = vector.broadcast %cst_28 : f32 to vector<16x1xf32>
      %42 = arith.divf %40, %41 : vector<16x1xf32>
      %43 = vector.broadcast %42 : vector<16x1xf32> to vector<16x32xf32>
      %44 = arith.subf %36, %43 : vector<16x32xf32>
      %45 = arith.mulf %44, %44 : vector<16x32xf32>
      %cst_29 = arith.constant dense<0.000000e+00> : vector<16xf32>
      %46 = vector.multi_reduction <add>, %45, %cst_29 [1] : vector<16x32xf32> to vector<16xf32>
      %47 = vector.shape_cast %46 : vector<16xf32> to vector<16x1xf32>
      %cst_30 = arith.constant 3.200000e+01 : f32
      %48 = vector.broadcast %cst_30 : f32 to vector<16x1xf32>
      %49 = arith.divf %47, %48 : vector<16x1xf32>
      %50 = vector.broadcast %42 : vector<16x1xf32> to vector<16x32xf32>
      %51 = arith.subf %36, %50 : vector<16x32xf32>
      %cst_31 = arith.constant 9.99999996E-13 : f32
      %52 = vector.broadcast %cst_31 : f32 to vector<16x1xf32>
      %53 = arith.addf %49, %52 : vector<16x1xf32>
      %54 = math.rsqrt %53 : vector<16x1xf32>
      %55 = vector.broadcast %54 : vector<16x1xf32> to vector<16x32xf32>
      %56 = arith.mulf %51, %55 : vector<16x32xf32>
      %57 = vector.broadcast %37 : vector<1x32xf32> to vector<16x32xf32>
      %58 = arith.mulf %56, %57 : vector<16x32xf32>
      %59 = vector.broadcast %38 : vector<1x32xf32> to vector<16x32xf32>
      %60 = arith.addf %58, %59 : vector<16x32xf32>
      %61 = arith.truncf %60 : vector<16x32xf32> to vector<16x32xbf16>
      %c0_32 = arith.constant 0 : index
      %c0_33 = arith.constant 0 : index
      %62 = vector.load %arg9[%c0_32, %c0_33] : memref<16x32xbf16, #tpu.memory_space<vmem>>, vector<16x32xbf16>
      tpu.vector_store %arg9[%c0_32, %c0_33], %61 {strides = array<i32>} : memref<16x32xbf16, #tpu.memory_space<vmem>>, vector<16x32xbf16>,
    } else {
    }
    return
  }
  func.func @transform_0(%arg0: i32, %arg1: i32) -> (i32, i32) {
    %c0_i32 = arith.constant 0 : i32
    %c0_i32_0 = arith.constant 0 : i32
    return %arg0, %c0_i32 : i32, i32
  }
  func.func @transform_1(%arg0: i32, %arg1: i32) -> (i32, i32) {
    %c0_i32 = arith.constant 0 : i32
    %c0_i32_0 = arith.constant 0 : i32
    return %c0_i32, %arg1 : i32, i32
  }
  func.func @transform_2(%arg0: i32, %arg1: i32) -> (i32, i32) {
    %c0_i32 = arith.constant 0 : i32
    %c0_i32_0 = arith.constant 0 : i32
    return %c0_i32, %arg1 : i32, i32
  }
  func.func @transform_3(%arg0: i32, %arg1: i32) -> (i32, i32) {
    %c0_i32 = arith.constant 0 : i32
    %c0_i32_0 = arith.constant 0 : i32
    return %arg1, %c0_i32 : i32, i32
  }
  func.func @transform_4(%arg0: i32, %arg1: i32) -> (i32, i32) {
    %c0_i32 = arith.constant 0 : i32
    %c0_i32_0 = arith.constant 0 : i32
    %c0_i32_1 = arith.constant 0 : i32
    return %c0_i32, %c0_i32_0 : i32, i32
  }
  func.func @transform_5(%arg0: i32, %arg1: i32) -> (i32, i32) {
    %c0_i32 = arith.constant 0 : i32
    %c0_i32_0 = arith.constant 0 : i32
    %c0_i32_1 = arith.constant 0 : i32
    return %c0_i32, %c0_i32_0 : i32, i32
  }
  func.func @transform_6(%arg0: i32, %arg1: i32) -> (i32, i32) {
    %c0_i32 = arith.constant 0 : i32
    %c0_i32_0 = arith.constant 0 : i32
    %c0_i32_1 = arith.constant 0 : i32
    return %c0_i32, %c0_i32_0 : i32, i32
  }
  func.func @transform_7(%arg0: i32, %arg1: i32) -> (i32, i32) {
    %c0_i32 = arith.constant 0 : i32
    %c0_i32_0 = arith.constant 0 : i32
    return %arg0, %c0_i32 : i32, i32
  }
}

module attributes {stable_mosaic.version = 11 : i64} {
  func.func @_head_kernel(%arg0: memref<2x32xbf16, #tpu.memory_space<vmem>>, %arg1: memref<32x32xbf16, #tpu.memory_space<vmem>>, %arg2: memref<1x32xf32, #tpu.memory_space<vmem>>, %arg3: memref<32x5xbf16, #tpu.memory_space<vmem>>, %arg4: memref<1x5xf32, #tpu.memory_space<vmem>>, %arg5: memref<2x5xf32, #tpu.memory_space<vmem>>) attributes {dimension_semantics = [], scalar_prefetch = 0 : i64, scratch_operands = 0 : i64, tpu.core_type = #tpu.core_type<tc>} {
    %c0 = arith.constant 0 : index
    %c0_0 = arith.constant 0 : index
    %0 = vector.load %arg0[%c0, %c0_0] : memref<2x32xbf16, #tpu.memory_space<vmem>>, vector<2x32xbf16>
    %c0_1 = arith.constant 0 : index
    %c0_2 = arith.constant 0 : index
    %1 = vector.load %arg1[%c0_1, %c0_2] : memref<32x32xbf16, #tpu.memory_space<vmem>>, vector<32x32xbf16>
    %cst = arith.constant dense<0.000000e+00> : vector<2x32xf32>
    %2 = tpu.matmul %0, %1, %cst {dimension_numbers = #tpu.dot_dimension_numbers<[1], [0], [0], [1], [0, 0, 1, 1], [], []>} : vector<2x32xbf16>, vector<32x32xbf16>, vector<2x32xf32> -> vector<2x32xf32>
    %c0_3 = arith.constant 0 : index
    %c0_4 = arith.constant 0 : index
    %3 = vector.load %arg2[%c0_3, %c0_4] : memref<1x32xf32, #tpu.memory_space<vmem>>, vector<1x32xf32>
    %4 = vector.broadcast %3 : vector<1x32xf32> to vector<2x32xf32>
    %5 = arith.addf %2, %4 : vector<2x32xf32>
    %6 = math.tanh %5 : vector<2x32xf32>
    %7 = arith.truncf %6 : vector<2x32xf32> to vector<2x32xbf16>
    %c0_5 = arith.constant 0 : index
    %c0_6 = arith.constant 0 : index
    %8 = vector.load %arg3[%c0_5, %c0_6] : memref<32x5xbf16, #tpu.memory_space<vmem>>, vector<32x5xbf16>
    %cst_7 = arith.constant dense<0.000000e+00> : vector<2x5xf32>
    %9 = tpu.matmul %7, %8, %cst_7 {dimension_numbers = #tpu.dot_dimension_numbers<[1], [0], [0], [1], [0, 0, 1, 1], [], []>} : vector<2x32xbf16>, vector<32x5xbf16>, vector<2x5xf32> -> vector<2x5xf32>
    %c0_8 = arith.constant 0 : index
    %c0_9 = arith.constant 0 : index
    %10 = vector.load %arg4[%c0_8, %c0_9] : memref<1x5xf32, #tpu.memory_space<vmem>>, vector<1x5xf32>
    %11 = vector.broadcast %10 : vector<1x5xf32> to vector<2x5xf32>
    %12 = arith.addf %9, %11 : vector<2x5xf32>
    %13 = arith.negf %12 : vector<2x5xf32>
    %14 = math.exp %13 : vector<2x5xf32>
    %cst_10 = arith.constant 1.000000e+00 : f32
    %15 = vector.broadcast %cst_10 : f32 to vector<2x5xf32>
    %16 = arith.addf %15, %14 : vector<2x5xf32>
    %17 = arith.divf %15, %16 : vector<2x5xf32>
    %c0_11 = arith.constant 0 : index
    %c0_12 = arith.constant 0 : index
    %18 = vector.load %arg5[%c0_11, %c0_12] : memref<2x5xf32, #tpu.memory_space<vmem>>, vector<2x5xf32>
    tpu.vector_store %arg5[%c0_11, %c0_12], %17 {strides = array<i32>} : memref<2x5xf32, #tpu.memory_space<vmem>>, vector<2x5xf32>,
    return
  }
}

</mosaic_0001>

<llo_original>
// kernel: bert_multilabel_cls_forward.13
$region0: #{bert_multilabel_cls_forward.13}
  #allocation0 [shape = 'u32[]', space=smem, size = 0x4, offset = 0x4, fixed_abs, tag = 'smem constant byte address 0x4 - core index']
  #allocation1 [shape = 'u32[72,128]{1,0:T(1,128)}', space=vmem, size = 0x9000, scoped, tag = 'internal scratch']
  %s0 = inlined_call_operand.vmem [shape: bf16[16,32], index: 0, kind: input, shape index: {}]
  %s1 = inlined_call_operand.vmem [shape: bf16[32,32], index: 1, kind: input, shape index: {}]
  %s2 = inlined_call_operand.vmem [shape: f32[1,32], index: 2, kind: input, shape index: {}]
  %s3 = inlined_call_operand.vmem [shape: bf16[16,32], index: 3, kind: input, shape index: {}]
  %s4 = inlined_call_operand.vmem [shape: f32[1,32], index: 4, kind: input, shape index: {}]
  %s5 = inlined_call_operand.vmem [shape: f32[1,32], index: 5, kind: input, shape index: {}]
  %s6 = inlined_call_operand.vmem [shape: bf16[16,32], index: 6, kind: output, shape index: {}]
  %s7 = sld [smem:[#allocation0]]
  $region34: #{bert_multilabel_cls_forward.13} parent=0
    _
  %s9 = ssub.s32 1, %s7
  %s10 = scalar_select 0, %s9, %s7
  // Predicated region
  $region2: #{bert_multilabel_cls_forward.13} parent=0 // pred_check
    _
  $region3: #{bert_multilabel_cls_forward.13} parent=0 // pred_check_branch
    %12 = sbr.rel (0) target = $region5
  $region4: #{bert_multilabel_cls_forward.13} parent=0 // pred_region
    _
  $region5: #{bert_multilabel_cls_forward.13} parent=0 // pred_fallthru
    _
  // Predicated region
  $region6: #{bert_multilabel_cls_forward.13} parent=0 // pred_check
    _
  $region7: #{bert_multilabel_cls_forward.13} parent=0 // pred_check_branch
    %14 = sbr.rel (0) target = $region9
  $region8: #{bert_multilabel_cls_forward.13} parent=0 // pred_region
    _
  $region9: #{bert_multilabel_cls_forward.13} parent=0 // pred_fallthru
    _
  // Predicated region
  $region10: #{bert_multilabel_cls_forward.13} parent=0 // pred_check
    _
  $region11: #{bert_multilabel_cls_forward.13} parent=0 // pred_check_branch
    %16 = sbr.rel (0) target = $region13
  $region12: #{bert_multilabel_cls_forward.13} parent=0 // pred_region
    _
  $region13: #{bert_multilabel_cls_forward.13} parent=0 // pred_fallthru
    _
  // Predicated region
  $region14: #{bert_multilabel_cls_forward.13} parent=0 // pred_check
    _
  $region15: #{bert_multilabel_cls_forward.13} parent=0 // pred_check_branch
    %18 = sbr.rel (0) target = $region17
  $region16: #{bert_multilabel_cls_forward.13} parent=0 // pred_region
    _
  $region17: #{bert_multilabel_cls_forward.13} parent=0 // pred_fallthru
    _
  // Predicated region
  $region18: #{bert_multilabel_cls_forward.13} parent=0 // pred_check
    _
  $region19: #{bert_multilabel_cls_forward.13} parent=0 // pred_check_branch
    %20 = sbr.rel (0) target = $region21
  $region20: #{bert_multilabel_cls_forward.13} parent=0 // pred_region
    _
  $region21: #{bert_multilabel_cls_forward.13} parent=0 // pred_fallthru
    _
  // Predicated region
  $region22: #{bert_multilabel_cls_forward.13} parent=0 // pred_check
    _
  $region23: #{bert_multilabel_cls_forward.13} parent=0 // pred_check_branch
    %22 = sbr.rel (0) target = $region25
  $region24: #{bert_multilabel_cls_forward.13} parent=0 // pred_region
    _
  $region25: #{bert_multilabel_cls_forward.13} parent=0 // pred_fallthru
    _
  %v24 = vld [vmem:[%s0] sm:$0xf]
  %v25 = vld [vmem:[%s0 + $0x4] sm:$0xf]
  %v26 = vld [vmem:[%s1] sm:$0xf]
  %v27 = vld [vmem:[%s1 + $0x4] sm:$0xf]
  %v28 = vld [vmem:[%s1 + $0x8] sm:$0xf]
  %v29 = vld [vmem:[%s1 + $0xc] sm:$0xf]
  %v30 = vld [vmem:[%s2] sm:$0x1]
  %v32 = vperm.slane %v30, 0
  %v36 = vunpack.c.l.b16 %v24
  %v37 = vunpack.c.l.b16 %v25
  %v38 = vpack.c.b16 %v37, %v36
  %v43 = vunpack.c.l.b16 %v26
  %v44 = vunpack.c.l.b16 %v27
  %v45 = vunpack.c.l.b16 %v28
  %v46 = vunpack.c.l.b16 %v29
  %v47 = vpack.c.b16 %v44, %v43
  %v48 = vpack.c.b16 %v46, %v45
  %vm51 = vcmask 261120
  %v53 = vsel %vm51, %v38, 0
  %55 = vmatpush.bf16.msra.mxu0 0
  %56 = vmatpush.bf16.msra.mxu0 0
  %57 = vmatpush.bf16.msra.mxu0 0
  %58 = vmatpush.bf16.msra.mxu0 0
  %59 = vmatpush.bf16.msra.mxu0 0
  %60 = vmatpush.bf16.msra.mxu0 0
  %61 = vmatpush.bf16.msra.mxu0 %v48
  %62 = vmatpush.bf16.msra.mxu0 %v47
  %63 = vmatmul.bf16.gmra.mxu0 %v53
  %v64 = vpop.f32.mrf.mxu0
  %v65 = vadd.f32 %v32, %v64
  %v66 = vpop.f32.mrf.mxu0
  %v67 = vadd.f32 %v32, %v66
  %68 = vdwg.mxu0
  %v69 = vld [vmem:[%s3] sm:$0xf]
  %v70 = vld [vmem:[%s3 + $0x4] sm:$0xf]
  %v71 = vunpack.c.l.bf16 %v69
  %v72 = vunpack.c.l.bf16 %v70
  %v73 = vadd.f32 %v65, %v71
  %v74 = vadd.f32 %v67, %v72
  %v75 = vld [vmem:[%s4] sm:$0x1]
  %v76 = vld [vmem:[%s5] sm:$0x1]
  %v77 = vsel %vm51, %v73, 0.0
  %78 = vadd.xlane.f32.xlu0 %v77
  %v79 = vpop.xlane.xlu0 %78
  %v80 = vsel %vm51, %v74, 0.0
  %81 = vadd.xlane.f32.xlu0 %v80
  %v82 = vpop.xlane.xlu0 %81
  %v83 = vrcp.pop 32.0
  %v84 = vmul.f32 32.0, %v83
  %v85 = vsub.f32 1.0, %v84
  %v86 = vmul.f32 %v83, %v85
  %v87 = vadd.f32 %v83, %v86
  %vm88 = vweird.f32 %v83
  %v89 = vsel %vm88, %v83, %v87
  %v90 = vmul.f32 %v79, %v89
  %v91 = vmul.f32 %v82, %v89
  %v92 = vsub.f32 %v73, %v90
  %v93 = vsub.f32 %v74, %v91
  %v94 = vmul.f32 %v92, %v92
  %v95 = vmul.f32 %v93, %v93
  %v96 = vsel %vm51, %v94, 0.0
  %97 = vadd.xlane.f32.xlu0 %v96
  %v98 = vpop.xlane.xlu0 %97
  %v99 = vsel %vm51, %v95, 0.0
  %100 = vadd.xlane.f32.xlu0 %v99
  %v101 = vpop.xlane.xlu0 %100
  %v102 = vmul.f32 %v98, %v89
  %v103 = vmul.f32 %v101, %v89
  %v104 = vadd.f32 %v102, 1e-12
  %v105 = vadd.f32 %v103, 1e-12
  %v106 = vrsqrt.pop %v104
  %v107 = vmul.f32 %v106, %v104
  %v108 = vmul.f32 %v107, %v106
  %v109 = vmul.f32 0.5, %v108
  %v110 = vsub.f32 1.5, %v109
  %v111 = vmul.f32 %v106, %v110
  %vm112 = vweird.f32 %v104
  %vm113 = vweird.f32 %v106
  %vm114 = vmor %vm112, %vm113
  %v115 = vsel %vm114, %v106, %v111
  %v116 = vrsqrt.pop %v105
  %v117 = vmul.f32 %v116, %v105
  %v118 = vmul.f32 %v117, %v116
  %v119 = vmul.f32 0.5, %v118
  %v120 = vsub.f32 1.5, %v119
  %v121 = vmul.f32 %v116, %v120
  %vm122 = vweird.f32 %v105
  %vm123 = vweird.f32 %v116
  %vm124 = vmor %vm122, %vm123
  %v125 = vsel %vm124, %v116, %v121
  %v126 = vmul.f32 %v92, %v115
  %v127 = vmul.f32 %v93, %v125
  %v129 = vperm.slane %v75, 0
  %v131 = vmul.f32 %v126, %v129
  %v132 = vmul.f32 %v127, %v129
  %v134 = vperm.slane %v76, 0
  %v136 = vadd.f32 %v131, %v134
  %v137 = vadd.f32 %v132, %v134
  %v138 = vpack.c.bf16 %v136, %v136
  %v139 = vpack.c.bf16 %v137, %v137
  %vm140 = vcmask 257024
  %141 = vst.msk [vmem:[%s6] sm:$0xf] %vm140, %v138
  %142 = vst.msk [vmem:[%s6 + $0x4] sm:$0xf] %vm140, %v139
  // Predicated region
  $region26: #{bert_multilabel_cls_forward.13} parent=0 // pred_check
    _
  $region27: #{bert_multilabel_cls_forward.13} parent=0 // pred_check_branch
    %144 = sbr.rel (0) target = $region29
  $region28: #{bert_multilabel_cls_forward.13} parent=0 // pred_region
    _
  $region29: #{bert_multilabel_cls_forward.13} parent=0 // pred_fallthru
    _
  // Predicated region
  $region30: #{bert_multilabel_cls_forward.13} parent=0 // pred_check
    _
  $region31: #{bert_multilabel_cls_forward.13} parent=0 // pred_check_branch
    %146 = sbr.rel (0) target = $region33
  $region32: #{bert_multilabel_cls_forward.13} parent=0 // pred_region
    _
  $region33: #{bert_multilabel_cls_forward.13} parent=0 // pred_fallthru
    _

// kernel: bert_multilabel_cls_forward.10
$region0: #{bert_multilabel_cls_forward.10}
  #allocation0 [shape = 'u32[]', space=smem, size = 0x4, offset = 0x4, fixed_abs, tag = 'smem constant byte address 0x4 - core index']
  #allocation1 [shape = 'u32[72,128]{1,0:T(1,128)}', space=vmem, size = 0x9000, scoped, tag = 'internal scratch']
  %s0 = inlined_call_operand.vmem [shape: f32[16,32], index: 0, kind: input, shape index: {}]
  %s1 = inlined_call_operand.vmem [shape: f32[1,32], index: 1, kind: input, shape index: {}]
  %s2 = inlined_call_operand.vmem [shape: f32[1,32], index: 2, kind: input, shape index: {}]
  %s3 = inlined_call_operand.vmem [shape: bf16[16,32], index: 3, kind: output, shape index: {}]
  %s4 = sld [smem:[#allocation0]]
  $region22: #{bert_multilabel_cls_forward.10} parent=0
    _
  %s6 = ssub.s32 1, %s4
  %s7 = scalar_select 0, %s6, %s4
  // Predicated region
  $region2: #{bert_multilabel_cls_forward.10} parent=0 // pred_check
    _
  $region3: #{bert_multilabel_cls_forward.10} parent=0 // pred_check_branch
    %9 = sbr.rel (0) target = $region5
  $region4: #{bert_multilabel_cls_forward.10} parent=0 // pred_region
    _
  $region5: #{bert_multilabel_cls_forward.10} parent=0 // pred_fallthru
    _
  // Predicated region
  $region6: #{bert_multilabel_cls_forward.10} parent=0 // pred_check
    _
  $region7: #{bert_multilabel_cls_forward.10} parent=0 // pred_check_branch
    %11 = sbr.rel (0) target = $region9
  $region8: #{bert_multilabel_cls_forward.10} parent=0 // pred_region
    _
  $region9: #{bert_multilabel_cls_forward.10} parent=0 // pred_fallthru
    _
  // Predicated region
  $region10: #{bert_multilabel_cls_forward.10} parent=0 // pred_check
    _
  $region11: #{bert_multilabel_cls_forward.10} parent=0 // pred_check_branch
    %13 = sbr.rel (0) target = $region13
  $region12: #{bert_multilabel_cls_forward.10} parent=0 // pred_region
    _
  $region13: #{bert_multilabel_cls_forward.10} parent=0 // pred_fallthru
    _
  %v14 = vld [vmem:[%s0] sm:$0xff]
  %v15 = vld [vmem:[%s0 + $0x8] sm:$0xff]
  %v16 = vld [vmem:[%s1] sm:$0x1]
  %v17 = vld [vmem:[%s2] sm:$0x1]
  %vm18 = vcmask 261120
  %v19 = vsel %vm18, %v14, 0.0
  %20 = vadd.xlane.f32.xlu0 %v19
  %v21 = vpop.xlane.xlu0 %20
  %v22 = vsel %vm18, %v15, 0.0
  %23 = vadd.xlane.f32.xlu0 %v22
  %v24 = vpop.xlane.xlu0 %23
  %v25 = vrcp.pop 32.0
  %v26 = vmul.f32 32.0, %v25
  %v27 = vsub.f32 1.0, %v26
  %v28 = vmul.f32 %v25, %v27
  %v29 = vadd.f32 %v25, %v28
  %vm30 = vweird.f32 %v25
  %v31 = vsel %vm30, %v25, %v29
  %v32 = vmul.f32 %v21, %v31
  %v33 = vmul.f32 %v24, %v31
  %v34 = vsub.f32 %v14, %v32
  %v35 = vsub.f32 %v15, %v33
  %v36 = vmul.f32 %v34, %v34
  %v37 = vmul.f32 %v35, %v35
  %v38 = vsel %vm18, %v36, 0.0
  %39 = vadd.xlane.f32.xlu0 %v38
  %v40 = vpop.xlane.xlu0 %39
  %v41 = vsel %vm18, %v37, 0.0
  %42 = vadd.xlane.f32.xlu0 %v41
  %v43 = vpop.xlane.xlu0 %42
  %v44 = vmul.f32 %v40, %v31
  %v45 = vmul.f32 %v43, %v31
  %v46 = vadd.f32 %v44, 1e-12
  %v47 = vadd.f32 %v45, 1e-12
  %v48 = vrsqrt.pop %v46
  %v49 = vmul.f32 %v48, %v46
  %v50 = vmul.f32 %v49, %v48
  %v51 = vmul.f32 0.5, %v50
  %v52 = vsub.f32 1.5, %v51
  %v53 = vmul.f32 %v48, %v52
  %vm54 = vweird.f32 %v46
  %vm55 = vweird.f32 %v48
  %vm56 = vmor %vm54, %vm55
  %v57 = vsel %vm56, %v48, %v53
  %v58 = vrsqrt.pop %v47
  %v59 = vmul.f32 %v58, %v47
  %v60 = vmul.f32 %v59, %v58
  %v61 = vmul.f32 0.5, %v60
  %v62 = vsub.f32 1.5, %v61
  %v63 = vmul.f32 %v58, %v62
  %vm64 = vweird.f32 %v47
  %vm65 = vweird.f32 %v58
  %vm66 = vmor %vm64, %vm65
  %v67 = vsel %vm66, %v58, %v63
  %v68 = vmul.f32 %v34, %v57
  %v69 = vmul.f32 %v35, %v67
  %v71 = vperm.slane %v16, 0
  %v73 = vmul.f32 %v68, %v71
  %v74 = vmul.f32 %v69, %v71
  %v76 = vperm.slane %v17, 0
  %v78 = vadd.f32 %v73, %v76
  %v79 = vadd.f32 %v74, %v76
  %v80 = vpack.c.bf16 %v78, %v78
  %v81 = vpack.c.bf16 %v79, %v79
  %vm82 = vcmask 257024
  %83 = vst.msk [vmem:[%s3] sm:$0xf] %vm82, %v80
  %84 = vst.msk [vmem:[%s3 + $0x4] sm:$0xf] %vm82, %v81
  // Predicated region
  $region14: #{bert_multilabel_cls_forward.10} parent=0 // pred_check
    _
  $region15: #{bert_multilabel_cls_forward.10} parent=0 // pred_check_branch
    %86 = sbr.rel (0) target = $region17
  $region16: #{bert_multilabel_cls_forward.10} parent=0 // pred_region
    _
  $region17: #{bert_multilabel_cls_forward.10} parent=0 // pred_fallthru
    _
  // Predicated region
  $region18: #{bert_multilabel_cls_forward.10} parent=0 // pred_check
    _
  $region19: #{bert_multilabel_cls_forward.10} parent=0 // pred_check_branch
    %88 = sbr.rel (0) target = $region21
  $region20: #{bert_multilabel_cls_forward.10} parent=0 // pred_region
    _
  $region21: #{bert_multilabel_cls_forward.10} parent=0 // pred_fallthru
    _

// kernel: bert_multilabel_cls_forward.11
$region0: #{bert_multilabel_cls_forward.11}
  #allocation0 [shape = 'u32[]', space=smem, size = 0x4, offset = 0x4, fixed_abs, tag = 'smem constant byte address 0x4 - core index']
  #allocation1 [shape = 'u32[72,128]{1,0:T(1,128)}', space=vmem, size = 0x9000, scoped, tag = 'internal scratch']
  #allocation2 [shape = 'f32[16,96]{1,0:T(8,128)}', space=vmem, size = 0x2000, scoped, tag = 'scratch operand']
  %s0 = inlined_call_operand.vmem [shape: bf16[16,32], index: 0, kind: input, shape index: {}]
  %s1 = inlined_call_operand.vmem [shape: bf16[32,96], index: 1, kind: input, shape index: {}]
  %s2 = inlined_call_operand.vmem [shape: f32[1,96], index: 2, kind: input, shape index: {}]
  %s3 = inlined_call_operand.vmem [shape: bf16[16,96], index: 3, kind: output, shape index: {}]
  %s4 = sld [smem:[#allocation0]]
  $region30: #{bert_multilabel_cls_forward.11} parent=0
    _
  %s6 = ssub.s32 1, %s4
  %s7 = scalar_select 0, %s6, %s4
  // Predicated region
  $region2: #{bert_multilabel_cls_forward.11} parent=0 // pred_check
    _
  $region3: #{bert_multilabel_cls_forward.11} parent=0 // pred_check_branch
    %9 = sbr.rel (0) target = $region5
  $region4: #{bert_multilabel_cls_forward.11} parent=0 // pred_region
    _
  $region5: #{bert_multilabel_cls_forward.11} parent=0 // pred_fallthru
    _
  // Predicated region
  $region6: #{bert_multilabel_cls_forward.11} parent=0 // pred_check
    _
  $region7: #{bert_multilabel_cls_forward.11} parent=0 // pred_check_branch
    %11 = sbr.rel (0) target = $region9
  $region8: #{bert_multilabel_cls_forward.11} parent=0 // pred_region
    _
  $region9: #{bert_multilabel_cls_forward.11} parent=0 // pred_fallthru
    _
  // Predicated region
  $region10: #{bert_multilabel_cls_forward.11} parent=0 // pred_check
    _
  $region11: #{bert_multilabel_cls_forward.11} parent=0 // pred_check_branch
    %13 = sbr.rel (0) target = $region13
  $region12: #{bert_multilabel_cls_forward.11} parent=0 // pred_region
    _
  $region13: #{bert_multilabel_cls_forward.11} parent=0 // pred_fallthru
    _
  %p15 = scmp.eq.s32.totalorder 0, 0
  // Predicated region
  $region14: #{bert_multilabel_cls_forward.11} parent=0 // pred_check
    %p16 = pneg %p15
  $region15: #{bert_multilabel_cls_forward.11} parent=0 // pred_check_branch
    %18 = sbr.rel (%p16) target = $region17
  $region16: #{bert_multilabel_cls_forward.11} parent=0 // pred_region
    %vm19 = vcmask 785408
    %20 = vst.msk [vmem:[#allocation2] sm:$0xff] %vm19, 0.0
    %21 = vst.msk [vmem:[#allocation2 + $0x8] sm:$0xff] %vm19, 0.0
  $region17: #{bert_multilabel_cls_forward.11} parent=0 // pred_fallthru
    _
  %v22 = vld [vmem:[#allocation2] sm:$0xff]
  %v23 = vld [vmem:[#allocation2 + $0x8] sm:$0xff]
  %v24 = vld [vmem:[%s0] sm:$0xf]
  %v25 = vld [vmem:[%s0 + $0x4] sm:$0xf]
  %v26 = vld [vmem:[%s1] sm:$0xf]
  %v27 = vld [vmem:[%s1 + $0x4] sm:$0xf]
  %v28 = vld [vmem:[%s1 + $0x8] sm:$0xf]
  %v29 = vld [vmem:[%s1 + $0xc] sm:$0xf]
  %v32 = vunpack.c.l.b16 %v24
  %v33 = vunpack.c.l.b16 %v25
  %v34 = vpack.c.b16 %v33, %v32
  %v39 = vunpack.c.l.b16 %v26
  %v40 = vunpack.c.l.b16 %v27
  %v41 = vunpack.c.l.b16 %v28
  %v42 = vunpack.c.l.b16 %v29
  %v43 = vpack.c.b16 %v40, %v39
  %v44 = vpack.c.b16 %v42, %v41
  %vm47 = vcmask 261120
  %v49 = vsel %vm47, %v34, 0
  %51 = vmatpush.bf16.msra.mxu0 0
  %52 = vmatpush.bf16.msra.mxu0 0
  %53 = vmatpush.bf16.msra.mxu0 0
  %54 = vmatpush.bf16.msra.mxu0 0
  %55 = vmatpush.bf16.msra.mxu0 0
  %56 = vmatpush.bf16.msra.mxu0 0
  %57 = vmatpush.bf16.msra.mxu0 %v44
  %58 = vmatpush.bf16.msra.mxu0 %v43
  %59 = vmatmul.bf16.gmra.mxu0 %v49
  %v60 = vpop.f32.mrf.mxu0
  %v61 = vadd.f32 0.0, %v60
  %v62 = vpop.f32.mrf.mxu0
  %v63 = vadd.f32 0.0, %v62
  %64 = vdwg.mxu0
  %v65 = vadd.f32 %v22, %v61
  %v66 = vadd.f32 %v23, %v63
  %vm67 = vcmask 785408
  %68 = vst.msk [vmem:[#allocation2] sm:$0xff] %vm67, %v65
  %69 = vst.msk [vmem:[#allocation2 + $0x8] sm:$0xff] %vm67, %v66
  // Predicated region
  $region18: #{bert_multilabel_cls_forward.11} parent=0 // pred_check
    %p70 = pneg %p15
  $region19: #{bert_multilabel_cls_forward.11} parent=0 // pred_check_branch
    %72 = sbr.rel (%p70) target = $region21
  $region20: #{bert_multilabel_cls_forward.11} parent=0 // pred_region
    %v73 = vld [vmem:[#allocation2] sm:$0xff]
    %v74 = vld [vmem:[#allocation2 + $0x8] sm:$0xff]
    %v75 = vld [vmem:[%s2] sm:$0x1]
    %v77 = vperm.slane %v75, 0
    %v79 = vadd.f32 %v73, %v77
    %v80 = vadd.f32 %v74, %v77
    %v81 = vpack.c.bf16 %v79, %v79
    %v82 = vpack.c.bf16 %v80, %v80
    %vm83 = vcmask 781312
    %84 = vst.msk [vmem:[%s3] sm:$0xf] %vm83, %v81
    %85 = vst.msk [vmem:[%s3 + $0x4] sm:$0xf] %vm83, %v82
  $region21: #{bert_multilabel_cls_forward.11} parent=0 // pred_fallthru
    _
  // Predicated region
  $region22: #{bert_multilabel_cls_forward.11} parent=0 // pred_check
    _
  $region23: #{bert_multilabel_cls_forward.11} parent=0 // pred_check_branch
    %87 = sbr.rel (0) target = $region25
  $region24: #{bert_multilabel_cls_forward.11} parent=0 // pred_region
    _
  $region25: #{bert_multilabel_cls_forward.11} parent=0 // pred_fallthru
    _
  // Predicated region
  $region26: #{bert_multilabel_cls_forward.11} parent=0 // pred_check
    _
  $region27: #{bert_multilabel_cls_forward.11} parent=0 // pred_check_branch
    %89 = sbr.rel (0) target = $region29
  $region28: #{bert_multilabel_cls_forward.11} parent=0 // pred_region
    _
  $region29: #{bert_multilabel_cls_forward.11} parent=0 // pred_fallthru
    _

// kernel: bert_multilabel_cls_forward.12
$region0: #{bert_multilabel_cls_forward.12}
  #allocation0 [shape = 'u32[]', space=smem, size = 0x4, offset = 0x4, fixed_abs, tag = 'smem constant byte address 0x4 - core index']
  #allocation1 [shape = 'u32[72,128]{1,0:T(1,128)}', space=vmem, size = 0x9000, scoped, tag = 'internal scratch']
  %s0 = inlined_call_operand.vmem [shape: bf16[2,8,96], index: 0, kind: input, shape index: {}, may-alias: {0,1,2}]
  %s1 = inlined_call_operand.vmem [shape: bf16[2,8,96], index: 1, kind: input, shape index: {}, may-alias: {0,1,2}]
  %s2 = inlined_call_operand.vmem [shape: bf16[2,8,96], index: 2, kind: input, shape index: {}, may-alias: {0,1,2}]
  %s3 = inlined_call_operand.vmem [shape: f32[2,1,8], index: 3, kind: input, shape index: {}]
  %s4 = inlined_call_operand.vmem [shape: bf16[2,8,32], index: 4, kind: output, shape index: {}]
  %s5 = sld [smem:[#allocation0]]
  $region49: #{bert_multilabel_cls_forward.12} parent=0
    _
  %s7 = ssub.s32 1, %s5
  %s8 = scalar_select 0, %s7, %s5
  loop: start=0, step=1, limit=4
  $region2: #{bert_multilabel_cls_forward.12} parent=0 // loop_pre_header
    _
  $region3: #{bert_multilabel_cls_forward.12} parent=0 // loop_header
    %s10 = sphi 0, %s14
    %p11 = scmp.ge.s32.totalorder %s10, 4
    %s17 = sphi 0, %s29
    %s18 = sphi 0, %s25
    %s19 = sphi 0, %s17
    %s20 = sphi 0, %s18
    %s21 = sphi 0, %s19
    %s22 = sphi 0, %s20
    %s32 = sphi 0, %s34
    %s35 = sphi 0, %s32
    %s36 = sphi 0, %s35
    %s52 = sphi 0, %s36
    %s58 = sphi 0, %s60
    %s61 = sphi 0, %s58
    %s62 = sphi 0, %s61
    %s78 = sphi 0, %s62
    %s84 = sphi 0, %s86
    %s87 = sphi 0, %s84
    %s88 = sphi 0, %s87
    %s104 = sphi 0, %s88
    %s110 = sphi 0, %s112
    %s113 = sphi 0, %s110
    %s114 = sphi 0, %s113
    %s130 = sphi 0, %s114
    %s138 = sphi 0, %s140
    %s141 = sphi 0, %s138
    %s142 = sphi 0, %s141
    %s158 = sphi 0, %s142
  $region4: #{bert_multilabel_cls_forward.12} parent=0 // loop_header_branch
    %13 = sbr.rel (%p11) target = $region8
  $region5: #{bert_multilabel_cls_forward.12} parent=0 // loop_body
    %s15 = ssub.s32 %s10, 1
    %s16 = ssub.s32 %s10, 2
    %s23 = sadd.s32 1, %s18
    %p24 = scmp.ge.s32.totalorder %s23, 1
    %s25 = scalar_select %p24, 0, %s23
    %s26 = sadd.s32 1, %s17
    %s27 = scalar_select %p24, %s26, %s17
    %p28 = scmp.ge.s32.totalorder %s27, 2
    %s29 = scalar_select %p28, 0, %s27
    %s30 = ssub.s32 %s17, %s29
    %p31 = scmp.eq.s32.totalorder %s30, 0
    %s33 = sadd.s32 %s32, 1
    %s34 = scalar_select %p31, %s32, %s33
    %p37 = pneg %p31
    %p38 = scmp.eq.s32.totalorder %s10, 1
    %p39 = por %p37, %p38
    %p40 = scmp.ne.s32.totalorder %s32, %s35
    %p41 = scmp.eq.s32.totalorder %s10, 0
    %p42 = por %p40, %p41
    %p43 = scmp.ne.s32.totalorder %s32, %s35
    %p44 = scmp.eq.s32.totalorder %s15, 1
    %p45 = por %p43, %p44
    %p46 = scmp.ne.s32.totalorder %s35, %s36
    %p47 = scmp.eq.s32.totalorder %s15, 0
    %p48 = por %p46, %p47
    %p49 = scmp.ne.s32.totalorder %s35, %s36
    %p50 = scmp.eq.s32.totalorder %s16, 1
    %p51 = por %p49, %p50
    %p53 = scmp.ne.s32.totalorder %s36, %s52
    %p54 = scmp.eq.s32.totalorder %s16, 0
    %p55 = por %p53, %p54
    %s56 = ssub.s32 %s17, %s29
    %p57 = scmp.eq.s32.totalorder %s56, 0
    %s59 = sadd.s32 %s58, 1
    %s60 = scalar_select %p57, %s58, %s59
    %p63 = pneg %p57
    %p64 = scmp.eq.s32.totalorder %s10, 1
    %p65 = por %p63, %p64
    %p66 = scmp.ne.s32.totalorder %s58, %s61
    %p67 = scmp.eq.s32.totalorder %s10, 0
    %p68 = por %p66, %p67
    %p69 = scmp.ne.s32.totalorder %s58, %s61
    %p70 = scmp.eq.s32.totalorder %s15, 1
    %p71 = por %p69, %p70
    %p72 = scmp.ne.s32.totalorder %s61, %s62
    %p73 = scmp.eq.s32.totalorder %s15, 0
    %p74 = por %p72, %p73
    %p75 = scmp.ne.s32.totalorder %s61, %s62
    %p76 = scmp.eq.s32.totalorder %s16, 1
    %p77 = por %p75, %p76
    %p79 = scmp.ne.s32.totalorder %s62, %s78
    %p80 = scmp.eq.s32.totalorder %s16, 0
    %p81 = por %p79, %p80
    %s82 = ssub.s32 %s17, %s29
    %p83 = scmp.eq.s32.totalorder %s82, 0
    %s85 = sadd.s32 %s84, 1
    %s86 = scalar_select %p83, %s84, %s85
    %p89 = pneg %p83
    %p90 = scmp.eq.s32.totalorder %s10, 1
    %p91 = por %p89, %p90
    %p92 = scmp.ne.s32.totalorder %s84, %s87
    %p93 = scmp.eq.s32.totalorder %s10, 0
    %p94 = por %p92, %p93
    %p95 = scmp.ne.s32.totalorder %s84, %s87
    %p96 = scmp.eq.s32.totalorder %s15, 1
    %p97 = por %p95, %p96
    %p98 = scmp.ne.s32.totalorder %s87, %s88
    %p99 = scmp.eq.s32.totalorder %s15, 0
    %p100 = por %p98, %p99
    %p101 = scmp.ne.s32.totalorder %s87, %s88
    %p102 = scmp.eq.s32.totalorder %s16, 1
    %p103 = por %p101, %p102
    %p105 = scmp.ne.s32.totalorder %s88, %s104
    %p106 = scmp.eq.s32.totalorder %s16, 0
    %p107 = por %p105, %p106
    %s108 = ssub.s32 %s17, %s29
    %p109 = scmp.eq.s32.totalorder %s108, 0
    %s111 = sadd.s32 %s110, 1
    %s112 = scalar_select %p109, %s110, %s111
    %p115 = pneg %p109
    %p116 = scmp.eq.s32.totalorder %s10, 1
    %p117 = por %p115, %p116
    %p118 = scmp.ne.s32.totalorder %s110, %s113
    %p119 = scmp.eq.s32.totalorder %s10, 0
    %p120 = por %p118, %p119
    %p121 = scmp.ne.s32.totalorder %s110, %s113
    %p122 = scmp.eq.s32.totalorder %s15, 1
    %p123 = por %p121, %p122
    %p124 = scmp.ne.s32.totalorder %s113, %s114
    %p125 = scmp.eq.s32.totalorder %s15, 0
    %p126 = por %p124, %p125
    %p127 = scmp.ne.s32.totalorder %s113, %s114
    %p128 = scmp.eq.s32.totalorder %s16, 1
    %p129 = por %p127, %p128
    %p131 = scmp.ne.s32.totalorder %s114, %s130
    %p132 = scmp.eq.s32.totalorder %s16, 0
    %p133 = por %p131, %p132
    %s134 = ssub.s32 %s17, %s29
    %s135 = ssub.s32 %s18, %s25
    %s136 = sor.u32 %s134, %s135
    %p137 = scmp.eq.s32.totalorder %s136, 0
    %s139 = sadd.s32 %s138, 1
    %s140 = scalar_select %p137, %s138, %s139
    %p143 = pneg %p137
    %p144 = scmp.eq.s32.totalorder %s10, 1
    %p145 = por %p143, %p144
    %p146 = scmp.ne.s32.totalorder %s138, %s141
    %p147 = scmp.eq.s32.totalorder %s10, 0
    %p148 = por %p146, %p147
    %p149 = scmp.ne.s32.totalorder %s138, %s141
    %p150 = scmp.eq.s32.totalorder %s15, 1
    %p151 = por %p149, %p150
    %p152 = scmp.ne.s32.totalorder %s141, %s142
    %p153 = scmp.eq.s32.totalorder %s15, 0
    %p154 = por %p152, %p153
    %p155 = scmp.ne.s32.totalorder %s141, %s142
    %p156 = scmp.eq.s32.totalorder %s16, 1
    %p157 = por %p155, %p156
    %p159 = scmp.ne.s32.totalorder %s142, %s158
    %p160 = scmp.eq.s32.totalorder %s16, 0
    %p161 = por %p159, %p160
    %p162 = scmp.le.s32.totalorder 1, %s10
    %p163 = scmp.lt.s32.totalorder %s10, 3
    %p164 = pnand %p162, %p163
    %p165 = pneg %p164
    // Predicated region
    $region9: #{bert_multilabel_cls_forward.12} parent=5 // pred_check
      _
    $region10: #{bert_multilabel_cls_forward.12} parent=5 // pred_check_branch
      %167 = sbr.rel (%p164) target = $region12
    $region11: #{bert_multilabel_cls_forward.12} parent=5 // pred_region
      %s168 = ssub.s32 %s10, 1
    $region12: #{bert_multilabel_cls_forward.12} parent=5 // pred_fallthru
      _
    %p169 = scmp.lt.s32.totalorder %s10, 2
    // Predicated region
    $region13: #{bert_multilabel_cls_forward.12} parent=5 // pred_check
      %p170 = pneg %p169
    $region14: #{bert_multilabel_cls_forward.12} parent=5 // pred_check_branch
      %172 = sbr.rel (%p170) target = $region16
    $region15: #{bert_multilabel_cls_forward.12} parent=5 // pred_region
      // Predicated region
      $region17: #{bert_multilabel_cls_forward.12} parent=15 // pred_check
        %p173 = pneg %p42
      $region18: #{bert_multilabel_cls_forward.12} parent=15 // pred_check_branch
        %175 = sbr.rel (%p173) target = $region20
      $region19: #{bert_multilabel_cls_forward.12} parent=15 // pred_region
        %p176 = scmp.lt.s32.totalorder %s17, 1
        %s177 = scalar_select %p176, %s17, 1
        %s178 = smul.addr %s177, 4
        %s179 = scalar_lea.vmem %s0, %s178
      $region20: #{bert_multilabel_cls_forward.12} parent=15 // pred_fallthru
        _
      // Predicated region
      $region21: #{bert_multilabel_cls_forward.12} parent=15 // pred_check
        %p180 = pneg %p68
      $region22: #{bert_multilabel_cls_forward.12} parent=15 // pred_check_branch
        %182 = sbr.rel (%p180) target = $region24
      $region23: #{bert_multilabel_cls_forward.12} parent=15 // pred_region
        %p183 = scmp.lt.s32.totalorder %s17, 1
        %s184 = scalar_select %p183, %s17, 1
        %s185 = smul.addr %s184, 4
        %s186 = scalar_lea.vmem %s1, %s185
      $region24: #{bert_multilabel_cls_forward.12} parent=15 // pred_fallthru
        _
      // Predicated region
      $region25: #{bert_multilabel_cls_forward.12} parent=15 // pred_check
        %p187 = pneg %p94
      $region26: #{bert_multilabel_cls_forward.12} parent=15 // pred_check_branch
        %189 = sbr.rel (%p187) target = $region28
      $region27: #{bert_multilabel_cls_forward.12} parent=15 // pred_region
        %p190 = scmp.lt.s32.totalorder %s17, 1
        %s191 = scalar_select %p190, %s17, 1
        %s192 = smul.addr %s191, 4
        %s193 = scalar_lea.vmem %s2, %s192
      $region28: #{bert_multilabel_cls_forward.12} parent=15 // pred_fallthru
        _
      // Predicated region
      $region29: #{bert_multilabel_cls_forward.12} parent=15 // pred_check
        %p194 = pneg %p120
      $region30: #{bert_multilabel_cls_forward.12} parent=15 // pred_check_branch
        %196 = sbr.rel (%p194) target = $region32
      $region31: #{bert_multilabel_cls_forward.12} parent=15 // pred_region
        %p197 = scmp.lt.s32.totalorder %s17, 1
        %s198 = scalar_select %p197, %s17, 1
        %s199 = scalar_lea.vmem %s3, %s198
      $region32: #{bert_multilabel_cls_forward.12} parent=15 // pred_fallthru
        _
    $region16: #{bert_multilabel_cls_forward.12} parent=5 // pred_fallthru
      _
    %p200 = scmp.le.s32.totalorder 1, %s10
    %p201 = scmp.lt.s32.totalorder %s10, 3
    %p202 = pnand %p200, %p201
    %p203 = pneg %p202
    // Predicated region
    $region33: #{bert_multilabel_cls_forward.12} parent=5 // pred_check
      _
    $region34: #{bert_multilabel_cls_forward.12} parent=5 // pred_check_branch
      %205 = sbr.rel (%p202) target = $region36
    $region35: #{bert_multilabel_cls_forward.12} parent=5 // pred_region
      %s206 = ssub.s32 %s10, 1
      %p207 = scmp.lt.s32.totalorder %s19, 1
      %s208 = scalar_select %p207, %s19, 1
      %s209 = smul.addr %s208, 4
      %s210 = scalar_lea.vmem %s0, %s209
      %p211 = pneg %p48
      %p212 = pneg %p45
      %p213 = scmp.lt.s32.totalorder %s19, 1
      %s214 = scalar_select %p213, %s19, 1
      %s215 = smul.addr %s214, 4
      %s216 = scalar_lea.vmem %s1, %s215
      %p217 = pneg %p74
      %p218 = pneg %p71
      %p219 = scmp.lt.s32.totalorder %s19, 1
      %s220 = scalar_select %p219, %s19, 1
      %s221 = smul.addr %s220, 4
      %s222 = scalar_lea.vmem %s2, %s221
      %p223 = pneg %p100
      %p224 = pneg %p97
      %p225 = scmp.lt.s32.totalorder %s19, 1
      %s226 = scalar_select %p225, %s19, 1
      %s227 = scalar_lea.vmem %s3, %s226
      %p228 = pneg %p126
      %p229 = pneg %p123
      %p230 = pneg %p154
      %p231 = pneg %p151
      %p232 = scmp.lt.s32.totalorder %s19, 1
      %s233 = scalar_select %p232, %s19, 1
      %p234 = scmp.lt.s32.totalorder %s20, 0
      %s235 = scalar_select %p234, %s20, 0
      %s236 = sadd.s32 %s235, %s233
      %s237 = smul.addr %s236, 4
      %s238 = scalar_lea.vmem %s4, %s237
      %p239 = scmp.lt.s32.totalorder %s19, 1
      %s240 = scalar_select %p239, %s19, 1
      %s241 = smul.addr %s240, 4
      %s242 = scalar_lea.vmem %s0, %s241
      %p243 = scmp.lt.s32.totalorder %s19, 1
      %s244 = scalar_select %p243, %s19, 1
      %s245 = smul.addr %s244, 4
      %s246 = scalar_lea.vmem %s1, %s245
      %p247 = scmp.lt.s32.totalorder %s19, 1
      %s248 = scalar_select %p247, %s19, 1
      %s249 = smul.addr %s248, 4
      %s250 = scalar_lea.vmem %s2, %s249
      %p251 = scmp.lt.s32.totalorder %s19, 1
      %s252 = scalar_select %p251, %s19, 1
      %s253 = scalar_lea.vmem %s3, %s252
      %p254 = scmp.lt.s32.totalorder %s19, 1
      %s255 = scalar_select %p254, %s19, 1
      %p256 = scmp.lt.s32.totalorder %s20, 0
      %s257 = scalar_select %p256, %s20, 0
      %s258 = sadd.s32 %s257, %s255
      %s259 = smul.addr %s258, 4
      %s260 = scalar_lea.vmem %s4, %s259
      %v262 = vld [vmem:[%s253] sm:$0x1]
      %v263 = vld [vmem:[%s242] sm:$0xf]
      %v264 = vld [vmem:[%s246] sm:$0xf]
      %v265 = vld [vmem:[%s250] sm:$0xf]
      %v267 = vperm.slane %v262, 0
      %v270 = vunpack.c.l.b16 %v264
      %v271 = vpack.c.b16 %v270, %v270
      %272 = vrot.lane.b32.xlu0 %v271, 96
      %v273 = vpop.permute.xlu0 %272
      %vm274 = vcmask 130048
      %v276 = vsel %vm274, %v263, 0
      %v279 = vsel %vm274, %v273, 0
      %281 = vmatpush.bf16.xpose.msra.mxu0 0
      %282 = vmatpush.bf16.xpose.msra.mxu0 0
      %283 = vmatpush.bf16.xpose.msra.mxu0 0
      %284 = vmatpush.bf16.xpose.msra.mxu0 0
      %285 = vmatpush.bf16.xpose.msra.mxu0 0
      %286 = vmatpush.bf16.xpose.msra.mxu0 0
      %287 = vmatpush.bf16.xpose.msra.mxu0 0
      %288 = vmatpush.bf16.xpose.msra.mxu0 %v279
      %289 = vmatmul.bf16.gmra.mxu0 %v276
      %v290 = vpop.f32.mrf.mxu0
      %v291 = vadd.f32 %v267, %v290
      %v292 = vpop.f32.mrf.mxu0
      %293 = vdwg.mxu0
      %vm294 = vcmask 64512
      %v295 = vsel %vm294, %v291, -inf
      %296 = vmax.xlane.f32.xlu0 %v295
      %v297 = vpop.xlane.xlu0 %296
      %v298 = vsub.f32 %v291, %v297
      %v299 = vmul.f32 %v298, 1.442695
      %v300 = vpow.pop %v299
      %v301 = vsel %vm294, %v300, 0.0
      %302 = vadd.xlane.f32.xlu0 %v301
      %v303 = vpop.xlane.xlu0 %302
      %v304 = vrcp.pop %v303
      %v305 = vmul.f32 %v300, %v304
      %v306 = vpack.c.bf16 %v305, %v305
      %v308 = vunpack.c.l.b16 %v265
      %v309 = vpack.c.b16 %v308, %v308
      %310 = vrot.lane.b32.xlu0 %v309, 64
      %v311 = vpop.permute.xlu0 %310
      %v313 = vsel %vm294, %v306, 0
      %vm315 = vcmask 1043456
      %v317 = vsel %vm315, %v311, 0
      %319 = vmatpush.bf16.msra.mxu0 0
      %320 = vmatpush.bf16.msra.mxu0 0
      %321 = vmatpush.bf16.msra.mxu0 0
      %322 = vmatpush.bf16.msra.mxu0 0
      %323 = vmatpush.bf16.msra.mxu0 0
      %324 = vmatpush.bf16.msra.mxu0 0
      %325 = vmatpush.bf16.msra.mxu0 0
      %326 = vmatpush.bf16.msra.mxu0 %v317
      %327 = vmatmul.bf16.gmra.mxu0 %v313
      %v328 = vpop.f32.mrf.mxu0
      %v329 = vadd.f32 0.0, %v328
      %v330 = vpop.f32.mrf.mxu0
      %331 = vdwg.mxu0
      %v332 = vpack.c.bf16 %v329, %v329
      %vm333 = vcmask 125952
      %334 = vst.msk [vmem:[%s260] sm:$0xf] %vm333, %v332
      %v335 = vld [vmem:[%s242] sm:$0xf]
      %v336 = vld [vmem:[%s246] sm:$0xf]
      %v337 = vld [vmem:[%s250] sm:$0xf]
      %v339 = vunpack.c.l.b16 %v335
      %v340 = vpack.c.b16 %v339, %v339
      %341 = vrot.lane.b32.xlu0 %v340, 112
      %v342 = vpop.permute.xlu0 %341
      %v344 = vunpack.c.l.b16 %v336
      %v345 = vpack.c.b16 %v344, %v344
      %346 = vrot.lane.b32.xlu0 %v345, 80
      %v347 = vpop.permute.xlu0 %346
      %v349 = vsel %vm274, %v342, 0
      %v352 = vsel %vm274, %v347, 0
      %354 = vmatpush.bf16.xpose.msra.mxu0 0
      %355 = vmatpush.bf16.xpose.msra.mxu0 0
      %356 = vmatpush.bf16.xpose.msra.mxu0 0
      %357 = vmatpush.bf16.xpose.msra.mxu0 0
      %358 = vmatpush.bf16.xpose.msra.mxu0 0
      %359 = vmatpush.bf16.xpose.msra.mxu0 0
      %360 = vmatpush.bf16.xpose.msra.mxu0 0
      %361 = vmatpush.bf16.xpose.msra.mxu0 %v352
      %362 = vmatmul.bf16.gmra.mxu0 %v349
      %v363 = vpop.f32.mrf.mxu0
      %v364 = vadd.f32 %v267, %v363
      %v365 = vpop.f32.mrf.mxu0
      %366 = vdwg.mxu0
      %v367 = vsel %vm294, %v364, -inf
      %368 = vmax.xlane.f32.xlu0 %v367
      %v369 = vpop.xlane.xlu0 %368
      %v370 = vsub.f32 %v364, %v369
      %v371 = vmul.f32 %v370, 1.442695
      %v372 = vpow.pop %v371
      %v373 = vsel %vm294, %v372, 0.0
      %374 = vadd.xlane.f32.xlu0 %v373
      %v375 = vpop.xlane.xlu0 %374
      %v376 = vrcp.pop %v375
      %v377 = vmul.f32 %v372, %v376
      %v378 = vpack.c.bf16 %v377, %v377
      %v380 = vunpack.c.l.b16 %v337
      %v381 = vpack.c.b16 %v380, %v380
      %382 = vrot.lane.b32.xlu0 %v381, 48
      %v383 = vpop.permute.xlu0 %382
      %v385 = vsel %vm294, %v378, 0
      %v388 = vsel %vm315, %v383, 0
      %390 = vmatpush.bf16.msra.mxu0 0
      %391 = vmatpush.bf16.msra.mxu0 0
      %392 = vmatpush.bf16.msra.mxu0 0
      %393 = vmatpush.bf16.msra.mxu0 0
      %394 = vmatpush.bf16.msra.mxu0 0
      %395 = vmatpush.bf16.msra.mxu0 0
      %396 = vmatpush.bf16.msra.mxu0 0
      %397 = vmatpush.bf16.msra.mxu0 %v388
      %398 = vmatmul.bf16.gmra.mxu0 %v385
      %v399 = vpop.f32.mrf.mxu0
      %v400 = vadd.f32 0.0, %v399
      %v401 = vpop.f32.mrf.mxu0
      %402 = vdwg.mxu0
      %v403 = vpack.c.bf16 %v400, %v400
      %405 = vrot.lane.b32.xlu0 %v403, 16
      %v406 = vpop.permute.xlu0 %405
      %vm408 = vcmask 257152
      %409 = vst.msk [vmem:[%s260] sm:$0xf] %vm408, %v406
      %p410 = scmp.lt.s32.totalorder %s19, 1
      %s411 = scalar_select %p410, %s19, 1
      %p412 = scmp.lt.s32.totalorder %s20, 0
      %s413 = scalar_select %p412, %s20, 0
      %s414 = sadd.s32 %s413, %s411
      %s415 = smul.addr %s414, 4
      %s416 = scalar_lea.vmem %s4, %s415
      // Predicated region
      $region37: #{bert_multilabel_cls_forward.12} parent=35 // pred_check
        %p417 = pneg %p151
      $region38: #{bert_multilabel_cls_forward.12} parent=35 // pred_check_branch
        %419 = sbr.rel (%p417) target = $region40
      $region39: #{bert_multilabel_cls_forward.12} parent=35 // pred_region
        _
      $region40: #{bert_multilabel_cls_forward.12} parent=35 // pred_fallthru
        _
    $region36: #{bert_multilabel_cls_forward.12} parent=5 // pred_fallthru
      _
    %p420 = scmp.le.s32.totalorder 2, %s10
    // Predicated region
    $region41: #{bert_multilabel_cls_forward.12} parent=5 // pred_check
      %p421 = pneg %p420
    $region42: #{bert_multilabel_cls_forward.12} parent=5 // pred_check_branch
      %423 = sbr.rel (%p421) target = $region44
    $region43: #{bert_multilabel_cls_forward.12} parent=5 // pred_region
      %s424 = ssub.s32 %s10, 2
      // Predicated region
      $region45: #{bert_multilabel_cls_forward.12} parent=43 // pred_check
        %p425 = pneg %p157
      $region46: #{bert_multilabel_cls_forward.12} parent=43 // pred_check_branch
        %427 = sbr.rel (%p425) target = $region48
      $region47: #{bert_multilabel_cls_forward.12} parent=43 // pred_region
        %p428 = scmp.lt.s32.totalorder %s21, 1
        %s429 = scalar_select %p428, %s21, 1
        %p430 = scmp.lt.s32.totalorder %s22, 0
        %s431 = scalar_select %p430, %s22, 0
        %s432 = sadd.s32 %s431, %s429
        %s433 = smul.addr %s432, 4
        %s434 = scalar_lea.vmem %s4, %s433
      $region48: #{bert_multilabel_cls_forward.12} parent=43 // pred_fallthru
        _
    $region44: #{bert_multilabel_cls_forward.12} parent=5 // pred_fallthru
      _
  $region6: #{bert_multilabel_cls_forward.12} parent=0 // loop_footer
    %s14 = sadd.s32 1, %s10
  $region7: #{bert_multilabel_cls_forward.12} parent=0 // loop_footer_branch
    %9 = sbr.rel target = $region3
  $region8: #{bert_multilabel_cls_forward.12} parent=0 // loop_exit
    _

// kernel: bert_multilabel_cls_forward.19
$region0: #{bert_multilabel_cls_forward.19}
  #allocation0 [shape = 'u32[]', space=smem, size = 0x4, offset = 0x4, fixed_abs, tag = 'smem constant byte address 0x4 - core index']
  #allocation1 [shape = 'u32[72,128]{1,0:T(1,128)}', space=vmem, size = 0x9000, scoped, tag = 'internal scratch']
  %s0 = inlined_call_operand.vmem [shape: bf16[2,32], index: 0, kind: input, shape index: {}]
  %s1 = inlined_call_operand.vmem [shape: bf16[32,32], index: 1, kind: input, shape index: {}]
  %s2 = inlined_call_operand.vmem [shape: f32[1,32], index: 2, kind: input, shape index: {}]
  %s3 = inlined_call_operand.vmem [shape: bf16[32,5], index: 3, kind: input, shape index: {}]
  %s4 = inlined_call_operand.vmem [shape: f32[1,5], index: 4, kind: input, shape index: {}]
  %s5 = inlined_call_operand.hbm [shape: f32[2,5], index: 5, kind: output, shape index: {}]
  %s6 = sld [smem:[#allocation0]]
  $region30: #{bert_multilabel_cls_forward.19} parent=0
    _
  %s8 = ssub.s32 1, %s6
  %s9 = scalar_select 0, %s8, %s6
  $region1: #{bert_multilabel_cls_forward.19} parent=0
    #allocation2 [shape = 'u8[1024]{0}', space=vmem, size = 0x400, scoped, tag = 'output window, operand 0, single buffered']
    #allocation3 [shape = 's32[1]{0}', space=sflag, size = 0x4, scoped, tag = 'scoped memory for bert_multilabel_cls_forward.19']
    %10 = vsyncpa [#allocation3], 0
    // Predicated region
    $region2: #{bert_multilabel_cls_forward.19} parent=1 // pred_check
      _
    $region3: #{bert_multilabel_cls_forward.19} parent=1 // pred_check_branch
      %12 = sbr.rel (0) target = $region5
    $region4: #{bert_multilabel_cls_forward.19} parent=1 // pred_region
      _
    $region5: #{bert_multilabel_cls_forward.19} parent=1 // pred_fallthru
      _
    // Predicated region
    $region6: #{bert_multilabel_cls_forward.19} parent=1 // pred_check
      _
    $region7: #{bert_multilabel_cls_forward.19} parent=1 // pred_check_branch
      %14 = sbr.rel (0) target = $region9
    $region8: #{bert_multilabel_cls_forward.19} parent=1 // pred_region
      _
    $region9: #{bert_multilabel_cls_forward.19} parent=1 // pred_fallthru
      _
    // Predicated region
    $region10: #{bert_multilabel_cls_forward.19} parent=1 // pred_check
      _
    $region11: #{bert_multilabel_cls_forward.19} parent=1 // pred_check_branch
      %16 = sbr.rel (0) target = $region13
    $region12: #{bert_multilabel_cls_forward.19} parent=1 // pred_region
      _
    $region13: #{bert_multilabel_cls_forward.19} parent=1 // pred_fallthru
      _
    // Predicated region
    $region14: #{bert_multilabel_cls_forward.19} parent=1 // pred_check
      _
    $region15: #{bert_multilabel_cls_forward.19} parent=1 // pred_check_branch
      %18 = sbr.rel (0) target = $region17
    $region16: #{bert_multilabel_cls_forward.19} parent=1 // pred_region
      _
    $region17: #{bert_multilabel_cls_forward.19} parent=1 // pred_fallthru
      _
    // Predicated region
    $region18: #{bert_multilabel_cls_forward.19} parent=1 // pred_check
      _
    $region19: #{bert_multilabel_cls_forward.19} parent=1 // pred_check_branch
      %20 = sbr.rel (0) target = $region21
    $region20: #{bert_multilabel_cls_forward.19} parent=1 // pred_region
      _
    $region21: #{bert_multilabel_cls_forward.19} parent=1 // pred_fallthru
      _
    %v22 = vld [vmem:[%s0] sm:$0x1]
    %v23 = vld [vmem:[%s1] sm:$0xf]
    %v24 = vld [vmem:[%s1 + $0x4] sm:$0xf]
    %v25 = vld [vmem:[%s1 + $0x8] sm:$0xf]
    %v26 = vld [vmem:[%s1 + $0xc] sm:$0xf]
    %v27 = vld [vmem:[%s2] sm:$0x1]
    %v29 = vperm.slane %v27, 0
    %v35 = vunpack.c.l.b16 %v23
    %v36 = vunpack.c.l.b16 %v24
    %v37 = vunpack.c.l.b16 %v25
    %v38 = vunpack.c.l.b16 %v26
    %v39 = vpack.c.b16 %v36, %v35
    %v40 = vpack.c.b16 %v38, %v37
    %vm43 = vcmask 261120
    %v45 = vsel %vm43, %v22, 0
    %47 = vmatpush.bf16.msra.mxu0 0
    %48 = vmatpush.bf16.msra.mxu0 0
    %49 = vmatpush.bf16.msra.mxu0 0
    %50 = vmatpush.bf16.msra.mxu0 0
    %51 = vmatpush.bf16.msra.mxu0 0
    %52 = vmatpush.bf16.msra.mxu0 0
    %53 = vmatpush.bf16.msra.mxu0 %v40
    %54 = vmatpush.bf16.msra.mxu0 %v39
    %55 = vmatmul.bf16.gmra.mxu0 %v45
    %v56 = vpop.f32.mrf.mxu0
    %v57 = vadd.f32 %v29, %v56
    %v58 = vpop.f32.mrf.mxu0
    %59 = vdwg.mxu0
    %v60 = vtanh.pop %v57
    %v61 = vpack.c.bf16 %v60, %v60
    %v62 = vld [vmem:[%s3] sm:$0xf]
    %v63 = vld [vmem:[%s3 + $0x4] sm:$0xf]
    %v64 = vld [vmem:[%s3 + $0x8] sm:$0xf]
    %v65 = vld [vmem:[%s3 + $0xc] sm:$0xf]
    %v66 = vld [vmem:[%s4] sm:$0x1]
    %v68 = vperm.slane %v66, 0
    %v74 = vunpack.c.l.b16 %v62
    %v75 = vunpack.c.l.b16 %v63
    %v76 = vunpack.c.l.b16 %v64
    %v77 = vunpack.c.l.b16 %v65
    %v78 = vpack.c.b16 %v75, %v74
    %v79 = vpack.c.b16 %v77, %v76
    %v83 = vsel %vm43, %v61, 0
    %85 = vmatpush.bf16.msra.mxu0 0
    %86 = vmatpush.bf16.msra.mxu0 0
    %87 = vmatpush.bf16.msra.mxu0 0
    %88 = vmatpush.bf16.msra.mxu0 0
    %89 = vmatpush.bf16.msra.mxu0 0
    %90 = vmatpush.bf16.msra.mxu0 0
    %91 = vmatpush.bf16.msra.mxu0 %v79
    %92 = vmatpush.bf16.msra.mxu0 %v78
    %93 = vmatmul.bf16.gmra.mxu0 %v83
    %v94 = vpop.f32.mrf.mxu0
    %v95 = vadd.f32 %v68, %v94
    %v96 = vpop.f32.mrf.mxu0
    %97 = vdwg.mxu0
    %v98 = vxor.u32 %v95, 2147483648
    %v99 = vmul.f32 %v98, 1.442695
    %v100 = vpow.pop %v99
    %v101 = vadd.f32 %v100, 1.0
    %v102 = vrcp.pop %v101
    %v103 = vmul.f32 %v101, %v102
    %v104 = vsub.f32 1.0, %v103
    %v105 = vmul.f32 %v102, %v104
    %v106 = vadd.f32 %v102, %v105
    %vm107 = vweird.f32 %v101
    %vm108 = vweird.f32 %v102
    %vm109 = vmor %vm107, %vm108
    %v110 = vsel %vm109, %v102, %v106
    %v111 = vand.u32 2147483647, %v101
    %vm112 = vcmp.eq.f32.partialorder %v111, 8.507059e+37
    %v113 = vand.u32 %v101, 2147483648
    %v114 = vor.u32 1.1754944e-38, %v113
    %v115 = vsel %vm112, %v114, %v110
    %v116 = vmul.f32 1.0, %v115
    %vm117 = vcmask 33792
    %118 = vst.msk [vmem:[#allocation2] sm:$0x3] %vm117, %v116
    // Predicated region
    $region22: #{bert_multilabel_cls_forward.19} parent=1 // pred_check
      _
    $region23: #{bert_multilabel_cls_forward.19} parent=1 // pred_check_branch
      %120 = sbr.rel (0) target = $region25
    $region24: #{bert_multilabel_cls_forward.19} parent=1 // pred_region
      %122 = vsyncadd [#allocation3], 0
      %s124 = sshll.u32 [#allocation2], 4
      %s125 = int_to_ptr.vmem [resolvable:$true] %s124
      %s126 = sshll.u32 %s5, 4
      %s127 = int_to_ptr.hbm [resolvable:$true] %s126
      %129 = dma.vmem_to_hbm [thread:$0]  %s125, 32, %s127, [#allocation3]
    $region25: #{bert_multilabel_cls_forward.19} parent=1 // pred_fallthru
      _
    // Predicated region
    $region26: #{bert_multilabel_cls_forward.19} parent=1 // pred_check
      _
    $region27: #{bert_multilabel_cls_forward.19} parent=1 // pred_check_branch
      %131 = sbr.rel (0) target = $region29
    $region28: #{bert_multilabel_cls_forward.19} parent=1 // pred_region
      %133 = dma.done [#allocation3], 32
    $region29: #{bert_multilabel_cls_forward.19} parent=1 // pred_fallthru
      _
    %134 = vsyncpa [#allocation3], 1

// kernel: bert_multilabel_cls_forward.14
$region0: #{bert_multilabel_cls_forward.14}
  #allocation0 [shape = 'u32[]', space=smem, size = 0x4, offset = 0x4, fixed_abs, tag = 'smem constant byte address 0x4 - core index']
  #allocation1 [shape = 'u32[72,128]{1,0:T(1,128)}', space=vmem, size = 0x9000, scoped, tag = 'internal scratch']
  #allocation2 [shape = 'f32[16,32]{1,0:T(8,128)}', space=vmem, size = 0x2000, scoped, tag = 'scratch operand']
  %s0 = inlined_call_operand.vmem [shape: bf16[16,32], index: 0, kind: input, shape index: {}]
  %s1 = inlined_call_operand.vmem [shape: bf16[32,64], index: 1, kind: input, shape index: {}]
  %s2 = inlined_call_operand.vmem [shape: f32[1,64], index: 2, kind: input, shape index: {}]
  %s3 = inlined_call_operand.vmem [shape: bf16[64,32], index: 3, kind: input, shape index: {}]
  %s4 = inlined_call_operand.vmem [shape: f32[1,32], index: 4, kind: input, shape index: {}]
  %s5 = inlined_call_operand.vmem [shape: f32[1,32], index: 5, kind: input, shape index: {}]
  %s6 = inlined_call_operand.vmem [shape: f32[1,32], index: 6, kind: input, shape index: {}]
  %s7 = inlined_call_operand.vmem [shape: bf16[16,32], index: 7, kind: output, shape index: {}]
  %s8 = sld [smem:[#allocation0]]
  $region46: #{bert_multilabel_cls_forward.14} parent=0
    _
  %s10 = ssub.s32 1, %s8
  %s11 = scalar_select 0, %s10, %s8
  // Predicated region
  $region2: #{bert_multilabel_cls_forward.14} parent=0 // pred_check
    _
  $region3: #{bert_multilabel_cls_forward.14} parent=0 // pred_check_branch
    %13 = sbr.rel (0) target = $region5
  $region4: #{bert_multilabel_cls_forward.14} parent=0 // pred_region
    _
  $region5: #{bert_multilabel_cls_forward.14} parent=0 // pred_fallthru
    _
  // Predicated region
  $region6: #{bert_multilabel_cls_forward.14} parent=0 // pred_check
    _
  $region7: #{bert_multilabel_cls_forward.14} parent=0 // pred_check_branch
    %15 = sbr.rel (0) target = $region9
  $region8: #{bert_multilabel_cls_forward.14} parent=0 // pred_region
    _
  $region9: #{bert_multilabel_cls_forward.14} parent=0 // pred_fallthru
    _
  // Predicated region
  $region10: #{bert_multilabel_cls_forward.14} parent=0 // pred_check
    _
  $region11: #{bert_multilabel_cls_forward.14} parent=0 // pred_check_branch
    %17 = sbr.rel (0) target = $region13
  $region12: #{bert_multilabel_cls_forward.14} parent=0 // pred_region
    _
  $region13: #{bert_multilabel_cls_forward.14} parent=0 // pred_fallthru
    _
  // Predicated region
  $region14: #{bert_multilabel_cls_forward.14} parent=0 // pred_check
    _
  $region15: #{bert_multilabel_cls_forward.14} parent=0 // pred_check_branch
    %19 = sbr.rel (0) target = $region17
  $region16: #{bert_multilabel_cls_forward.14} parent=0 // pred_region
    _
  $region17: #{bert_multilabel_cls_forward.14} parent=0 // pred_fallthru
    _
  // Predicated region
  $region18: #{bert_multilabel_cls_forward.14} parent=0 // pred_check
    _
  $region19: #{bert_multilabel_cls_forward.14} parent=0 // pred_check_branch
    %21 = sbr.rel (0) target = $region21
  $region20: #{bert_multilabel_cls_forward.14} parent=0 // pred_region
    _
  $region21: #{bert_multilabel_cls_forward.14} parent=0 // pred_fallthru
    _
  // Predicated region
  $region22: #{bert_multilabel_cls_forward.14} parent=0 // pred_check
    _
  $region23: #{bert_multilabel_cls_forward.14} parent=0 // pred_check_branch
    %23 = sbr.rel (0) target = $region25
  $region24: #{bert_multilabel_cls_forward.14} parent=0 // pred_region
    _
  $region25: #{bert_multilabel_cls_forward.14} parent=0 // pred_fallthru
    _
  // Predicated region
  $region26: #{bert_multilabel_cls_forward.14} parent=0 // pred_check
    _
  $region27: #{bert_multilabel_cls_forward.14} parent=0 // pred_check_branch
    %25 = sbr.rel (0) target = $region29
  $region28: #{bert_multilabel_cls_forward.14} parent=0 // pred_region
    _
  $region29: #{bert_multilabel_cls_forward.14} parent=0 // pred_fallthru
    _
  %p27 = scmp.eq.s32.totalorder 0, 0
  // Predicated region
  $region30: #{bert_multilabel_cls_forward.14} parent=0 // pred_check
    %p28 = pneg %p27
  $region31: #{bert_multilabel_cls_forward.14} parent=0 // pred_check_branch
    %30 = sbr.rel (%p28) target = $region33
  $region32: #{bert_multilabel_cls_forward.14} parent=0 // pred_region
    %vm31 = vcmask 261120
    %32 = vst.msk [vmem:[#allocation2] sm:$0xff] %vm31, 0.0
    %33 = vst.msk [vmem:[#allocation2 + $0x8] sm:$0xff] %vm31, 0.0
  $region33: #{bert_multilabel_cls_forward.14} parent=0 // pred_fallthru
    _
  %v34 = vld [vmem:[%s0] sm:$0xf]
  %v35 = vld [vmem:[%s0 + $0x4] sm:$0xf]
  %v36 = vld [vmem:[%s1] sm:$0xf]
  %v37 = vld [vmem:[%s1 + $0x4] sm:$0xf]
  %v38 = vld [vmem:[%s1 + $0x8] sm:$0xf]
  %v39 = vld [vmem:[%s1 + $0xc] sm:$0xf]
  %v40 = vld [vmem:[%s2] sm:$0x1]
  %v42 = vperm.slane %v40, 0
  %v46 = vunpack.c.l.b16 %v34
  %v47 = vunpack.c.l.b16 %v35
  %v48 = vpack.c.b16 %v47, %v46
  %v53 = vunpack.c.l.b16 %v36
  %v54 = vunpack.c.l.b16 %v37
  %v55 = vunpack.c.l.b16 %v38
  %v56 = vunpack.c.l.b16 %v39
  %v57 = vpack.c.b16 %v54, %v53
  %v58 = vpack.c.b16 %v56, %v55
  %vm61 = vcmask 261120
  %v63 = vsel %vm61, %v48, 0
  %65 = vmatpush.bf16.msra.mxu0 0
  %66 = vmatpush.bf16.msra.mxu0 0
  %67 = vmatpush.bf16.msra.mxu0 0
  %68 = vmatpush.bf16.msra.mxu0 0
  %69 = vmatpush.bf16.msra.mxu0 0
  %70 = vmatpush.bf16.msra.mxu0 0
  %71 = vmatpush.bf16.msra.mxu0 %v58
  %72 = vmatpush.bf16.msra.mxu0 %v57
  %73 = vmatmul.bf16.gmra.mxu0 %v63
  %v74 = vpop.f32.mrf.mxu0
  %v75 = vadd.f32 %v42, %v74
  %v76 = vpop.f32.mrf.mxu0
  %v77 = vadd.f32 %v42, %v76
  %78 = vdwg.mxu0
  %v79 = vmul.f32 %v75, %v75
  %v80 = vmul.f32 %v77, %v77
  %v81 = vmul.f32 %v75, %v79
  %v82 = vmul.f32 %v77, %v80
  %v83 = vmul.f32 %v81, 0.044715
  %v84 = vmul.f32 %v82, 0.044715
  %v85 = vadd.f32 %v75, %v83
  %v86 = vadd.f32 %v77, %v84
  %v87 = vmul.f32 %v85, 0.7978846
  %v88 = vmul.f32 %v86, 0.7978846
  %v89 = vtanh.pop %v87
  %v90 = vtanh.pop %v88
  %v91 = vadd.f32 %v89, 1.0
  %v92 = vadd.f32 %v90, 1.0
  %v93 = vmul.f32 %v91, 0.5
  %v94 = vmul.f32 %v92, 0.5
  %v95 = vmul.f32 %v75, %v93
  %v96 = vmul.f32 %v77, %v94
  %v97 = vld [vmem:[#allocation2] sm:$0xff]
  %v98 = vld [vmem:[#allocation2 + $0x8] sm:$0xff]
  %v99 = vpack.c.bf16 %v96, %v95
  %v100 = vld [vmem:[%s3] sm:$0xf]
  %v101 = vld [vmem:[%s3 + $0x4] sm:$0xf]
  %v102 = vld [vmem:[%s3 + $0x8] sm:$0xf]
  %v103 = vld [vmem:[%s3 + $0xc] sm:$0xf]
  %v104 = vld [vmem:[%s3 + $0x10] sm:$0xf]
  %v105 = vld [vmem:[%s3 + $0x14] sm:$0xf]
  %v106 = vld [vmem:[%s3 + $0x18] sm:$0xf]
  %v107 = vld [vmem:[%s3 + $0x1c] sm:$0xf]
  %v116 = vunpack.c.l.b16 %v100
  %v117 = vunpack.c.l.b16 %v101
  %v118 = vunpack.c.l.b16 %v102
  %v119 = vunpack.c.l.b16 %v103
  %v120 = vunpack.c.l.b16 %v104
  %v121 = vunpack.c.l.b16 %v105
  %v122 = vunpack.c.l.b16 %v106
  %v123 = vunpack.c.l.b16 %v107
  %v124 = vpack.c.b16 %v117, %v116
  %v125 = vpack.c.b16 %v119, %v118
  %v126 = vpack.c.b16 %v121, %v120
  %v127 = vpack.c.b16 %v123, %v122
  %vm132 = vcmask 523264
  %v134 = vsel %vm132, %v99, 0
  %136 = vmatpush.bf16.msra.mxu0 0
  %137 = vmatpush.bf16.msra.mxu0 0
  %138 = vmatpush.bf16.msra.mxu0 0
  %139 = vmatpush.bf16.msra.mxu0 0
  %140 = vmatpush.bf16.msra.mxu0 %v127
  %141 = vmatpush.bf16.msra.mxu0 %v126
  %142 = vmatpush.bf16.msra.mxu0 %v125
  %143 = vmatpush.bf16.msra.mxu0 %v124
  %144 = vmatmul.bf16.gmra.mxu0 %v134
  %v145 = vpop.f32.mrf.mxu0
  %v146 = vadd.f32 0.0, %v145
  %v147 = vpop.f32.mrf.mxu0
  %v148 = vadd.f32 0.0, %v147
  %149 = vdwg.mxu0
  %v150 = vadd.f32 %v97, %v146
  %v151 = vadd.f32 %v98, %v148
  %152 = vst.msk [vmem:[#allocation2] sm:$0xff] %vm61, %v150
  %153 = vst.msk [vmem:[#allocation2 + $0x8] sm:$0xff] %vm61, %v151
  // Predicated region
  $region34: #{bert_multilabel_cls_forward.14} parent=0 // pred_check
    %p154 = pneg %p27
  $region35: #{bert_multilabel_cls_forward.14} parent=0 // pred_check_branch
    %156 = sbr.rel (%p154) target = $region37
  $region36: #{bert_multilabel_cls_forward.14} parent=0 // pred_region
    %v157 = vld [vmem:[#allocation2] sm:$0xff]
    %v158 = vld [vmem:[#allocation2 + $0x8] sm:$0xff]
    %v159 = vld [vmem:[%s4] sm:$0x1]
    %v161 = vperm.slane %v159, 0
    %v163 = vadd.f32 %v157, %v161
    %v164 = vadd.f32 %v158, %v161
    %v165 = vunpack.c.l.bf16 %v34
    %v166 = vunpack.c.l.bf16 %v35
    %v167 = vadd.f32 %v163, %v165
    %v168 = vadd.f32 %v164, %v166
    %v169 = vld [vmem:[%s5] sm:$0x1]
    %v170 = vld [vmem:[%s6] sm:$0x1]
    %v171 = vsel %vm61, %v167, 0.0
    %172 = vadd.xlane.f32.xlu0 %v171
    %v173 = vpop.xlane.xlu0 %172
    %v174 = vsel %vm61, %v168, 0.0
    %175 = vadd.xlane.f32.xlu0 %v174
    %v176 = vpop.xlane.xlu0 %175
    %v177 = vrcp.pop 32.0
    %v178 = vmul.f32 32.0, %v177
    %v179 = vsub.f32 1.0, %v178
    %v180 = vmul.f32 %v177, %v179
    %v181 = vadd.f32 %v177, %v180
    %vm182 = vweird.f32 %v177
    %v183 = vsel %vm182, %v177, %v181
    %v184 = vmul.f32 %v173, %v183
    %v185 = vmul.f32 %v176, %v183
    %v186 = vsub.f32 %v167, %v184
    %v187 = vsub.f32 %v168, %v185
    %v188 = vmul.f32 %v186, %v186
    %v189 = vmul.f32 %v187, %v187
    %v190 = vsel %vm61, %v188, 0.0
    %191 = vadd.xlane.f32.xlu0 %v190
    %v192 = vpop.xlane.xlu0 %191
    %v193 = vsel %vm61, %v189, 0.0
    %194 = vadd.xlane.f32.xlu0 %v193
    %v195 = vpop.xlane.xlu0 %194
    %v196 = vmul.f32 %v192, %v183
    %v197 = vmul.f32 %v195, %v183
    %v198 = vadd.f32 %v196, 1e-12
    %v199 = vadd.f32 %v197, 1e-12
    %v200 = vrsqrt.pop %v198
    %v201 = vmul.f32 %v200, %v198
    %v202 = vmul.f32 %v201, %v200
    %v203 = vmul.f32 0.5, %v202
    %v204 = vsub.f32 1.5, %v203
    %v205 = vmul.f32 %v200, %v204
    %vm206 = vweird.f32 %v198
    %vm207 = vweird.f32 %v200
    %vm208 = vmor %vm206, %vm207
    %v209 = vsel %vm208, %v200, %v205
    %v210 = vrsqrt.pop %v199
    %v211 = vmul.f32 %v210, %v199
    %v212 = vmul.f32 %v211, %v210
    %v213 = vmul.f32 0.5, %v212
    %v214 = vsub.f32 1.5, %v213
    %v215 = vmul.f32 %v210, %v214
    %vm216 = vweird.f32 %v199
    %vm217 = vweird.f32 %v210
    %vm218 = vmor %vm216, %vm217
    %v219 = vsel %vm218, %v210, %v215
    %v220 = vmul.f32 %v186, %v209
    %v221 = vmul.f32 %v187, %v219
    %v223 = vperm.slane %v169, 0
    %v225 = vmul.f32 %v220, %v223
    %v226 = vmul.f32 %v221, %v223
    %v228 = vperm.slane %v170, 0
    %v230 = vadd.f32 %v225, %v228
    %v231 = vadd.f32 %v226, %v228
    %v232 = vpack.c.bf16 %v230, %v230
    %v233 = vpack.c.bf16 %v231, %v231
    %vm234 = vcmask 257024
    %235 = vst.msk [vmem:[%s7] sm:$0xf] %vm234, %v232
    %236 = vst.msk [vmem:[%s7 + $0x4] sm:$0xf] %vm234, %v233
  $region37: #{bert_multilabel_cls_forward.14} parent=0 // pred_fallthru
    _
  // Predicated region
  $region38: #{bert_multilabel_cls_forward.14} parent=0 // pred_check
    _
  $region39: #{bert_multilabel_cls_forward.14} parent=0 // pred_check_branch
    %238 = sbr.rel (0) target = $region41
  $region40: #{bert_multilabel_cls_forward.14} parent=0 // pred_region
    _
  $region41: #{bert_multilabel_cls_forward.14} parent=0 // pred_fallthru
    _
  // Predicated region
  $region42: #{bert_multilabel_cls_forward.14} parent=0 // pred_check
    _
  $region43: #{bert_multilabel_cls_forward.14} parent=0 // pred_check_branch
    %240 = sbr.rel (0) target = $region45
  $region44: #{bert_multilabel_cls_forward.14} parent=0 // pred_region
    _
  $region45: #{bert_multilabel_cls_forward.14} parent=0 // pred_fallthru
    _

</llo_original>
